<compile_context>
chip_gen: v7x
topology: tpu7x:2x2x1
jax: 0.10.0
libtpu: 0.0.40
codegen_flags: <defaults>
</compile_context>

<pallas_src>
import functools
import math

import jax
import jax.numpy as jnp
from jax import lax
from jax.experimental import pallas as pl
from jax.experimental.pallas import tpu as pltpu

IN_FEATURES = 4096
HIDDEN1 = 128
HIDDEN2 = 64
OUT_FEATURES = 40
OUT_PAD = 128                    # lane-dense (multiple-of-128) padded output width
_SUB = 128                       # rows per in-kernel sub-chunk (bounds live f32 values)
_VMEM_LIMIT = 48 * 1024 * 1024   # safe on v5e/v6e (128 MiB VMEM) and v7x (64 MiB VMEM)


def _round_up(n, m):
    return (n + m - 1) // m * m


@functools.lru_cache(maxsize=None)
def _vmem_capacity_bytes():
    try:
        return int(pltpu.get_tpu_info().vmem_capacity_bytes)
    except Exception:
        return 64 * 1024 * 1024          # conservative fallback (v7x-sized)


def _default_batch_tile(itemsize):
    if _vmem_capacity_bytes() >= 100 * 1024 * 1024:   # v5e / v6e: 128 MiB VMEM
        return 1024
    return 1024 if itemsize <= 2 else 512              # v7x: 64 MiB VMEM


# --------------------------------------------------------------------------- #
# Kernel
# --------------------------------------------------------------------------- #
def _mlp_kernel(x_ref, w1_ref, b1_ref, w2_ref, b2_ref, w3_ref, b3_ref, o_ref):
    tb = x_ref.shape[0]
    # Process the batch tile in <=128-row sub-chunks so h1/h2 never become large
    # live f32 values when tb is 512-1024.
    sub = _SUB if (tb > _SUB and tb % _SUB == 0) else tb
    n_sub = tb // sub

    # Small operands / bias broadcasts hoisted OUT of the unrolled loop (JAX
    # does not CSE broadcast_in_dim, so build them once instead of per-iter).
    b1 = jnp.broadcast_to(b1_ref[...], (sub, HIDDEN1))
    b2 = jnp.broadcast_to(b2_ref[...], (sub, HIDDEN2))
    b3 = jnp.broadcast_to(b3_ref[...], (sub, OUT_PAD))
    w2 = w2_ref[...]
    w3 = w3_ref[...]

    def body(c, carry):
        r = pl.multiple_of(c * sub, sub)
        x = x_ref[pl.ds(r, sub), :]
        # w1 (up to 2 MiB) is read from its ref inside the dot so the unrolled
        # loop does not carry a large hoisted value across iterations.
        # NOTE: default-precision f32 dot uses the MXU bf16-pass path; pass
        # precision=lax.Precision.HIGHEST if near-bitwise f32 is required.
        h1 = jnp.dot(x, w1_ref[...], preferred_element_type=jnp.float32) + b1
        h1 = jax.nn.sigmoid(h1)
        h2 = jnp.dot(h1, w2, preferred_element_type=jnp.float32) + b2
        h2 = jnp.maximum(h2, 0.0)
        out = jnp.dot(h2, w3, preferred_element_type=jnp.float32) + b3
        o_ref[pl.ds(r, sub), :] = out.astype(o_ref.dtype)
        return carry

    lax.fori_loop(0, n_sub, body, 0, unroll=True)


# --------------------------------------------------------------------------- #
# Jitted wrapper around pallas_call
# --------------------------------------------------------------------------- #
@functools.partial(jax.jit, static_argnames=("tb_eff",))
def _forward_impl(x, w1, b1, w2, b2, w3p, b3p, *, tb_eff):
    B = x.shape[0]
    grid = (pl.cdiv(B, tb_eff),)

    def const_spec(a):
        # Constant block index across the grid -> the small weight/bias tiles
        # are fetched once and stay resident in VMEM.
        return pl.BlockSpec(a.shape, lambda i: (0, 0))

    flops = 2 * B * (IN_FEATURES * HIDDEN1 + HIDDEN1 * HIDDEN2 + HIDDEN2 * OUT_PAD)
    bytes_accessed = int(
        x.size * x.dtype.itemsize
        + w1.size * w1.dtype.itemsize
        + 4 * (b1.size + w2.size + b2.size + w3p.size + b3p.size)
        + 4 * B * OUT_PAD)
    cost = pl.CostEstimate(flops=flops, transcendentals=B * HIDDEN1,
                           bytes_accessed=bytes_accessed)

    out = pl.pallas_call(
        _mlp_kernel,
        out_shape=jax.ShapeDtypeStruct((B, OUT_PAD), jnp.float32),
        grid_spec=pltpu.PrefetchScalarGridSpec(
            num_scalar_prefetch=0,
            grid=grid,
            in_specs=[
                # x: batch-tiled; the last tile may be a partial boundary block
                # (no host-side padding copy). If xprof shows exposed DMA on
                # this stream (bf16 path), bump pipeline_mode=pl.Buffered(3).
                pl.BlockSpec((tb_eff, IN_FEATURES), lambda i: (i, 0)),
                const_spec(w1), const_spec(b1),
                const_spec(w2), const_spec(b2),
                const_spec(w3p), const_spec(b3p),
            ],
            out_specs=pl.BlockSpec((tb_eff, OUT_PAD), lambda i: (i, 0)),
        ),
        compiler_params=pltpu.CompilerParams(
            dimension_semantics=("parallel",),
            vmem_limit_bytes=_VMEM_LIMIT,
        ),
        cost_estimate=cost,
    )(x, w1, b1, w2, b2, w3p, b3p)
    return out[:, :OUT_FEATURES]


# --------------------------------------------------------------------------- #
# Public API
# --------------------------------------------------------------------------- #
def prepare_params(params, *, bf16_inputs=False):
    """One-time prep: pad the last layer 40 -> 128 lane-dense output columns
    (unmasked 128-lane stores in the kernel) and optionally cast w1 to bf16
    for the bf16-x fast path. Call once and reuse the result."""
    w1 = params["w1"]
    w3, b3 = params["w3"], params["b3"]
    w3p = jnp.zeros((HIDDEN2, OUT_PAD), jnp.float32).at[:, :OUT_FEATURES].set(
        w3.astype(jnp.float32))
    b3p = jnp.zeros((1, OUT_PAD), jnp.float32).at[:, :OUT_FEATURES].set(
        b3.astype(jnp.float32))
    if bf16_inputs:
        w1 = w1.astype(jnp.bfloat16)
    return dict(w1=w1, b1=params["b1"], w2=params["w2"], b2=params["b2"],
                w3p=w3p, b3p=b3p)


def simple_model_forward(x, params, *, tb=None):
    """x: [B, 4096] float32 or bfloat16. params: raw dict (w1..b3, W as [in,out])
    or the output of prepare_params()."""
    B, F = x.shape
    assert F == IN_FEATURES
    x_is_bf16 = x.dtype == jnp.bfloat16

    if "w3p" not in params:                      # raw params: prep (prefer prepare_params upfront)
        params = prepare_params(params, bf16_inputs=x_is_bf16)
    w1 = params["w1"]
    if x_is_bf16 and w1.dtype != jnp.bfloat16:
        # Tiny one-off cast (2 MiB); for zero per-call overhead pass
        # prepare_params(params, bf16_inputs=True).
        w1 = w1.astype(jnp.bfloat16)

    row_align = 16 if x_is_bf16 else 8           # sublane multiple for the batch tile
    if tb is None:
        tb = _default_batch_tile(x.dtype.itemsize)
    tb = max(row_align, _round_up(tb, row_align))

    # Guarantee >=2 grid steps whenever B allows, so ("parallel",) can shard the
    # grid across both TensorCores on v7x; otherwise cover B with a single tile.
    if B >= 2 * row_align:
        max_tile = _round_up(-(-B // 2), row_align)
    else:
        max_tile = _round_up(B, row_align)
    tb_eff = min(tb, max_tile)

    return _forward_impl(x, w1, params["b1"], params["w2"], params["b2"],
                         params["w3p"], params["b3p"], tb_eff=tb_eff)


def init_params(key):
    """Deterministic init mimicking torch.nn.Linear default (U[-1/sqrt(fan_in), +...])."""
    ks = jax.random.split(key, 6)

    def linear(kw, kb, fan_in, fan_out):
        bound = 1.0 / math.sqrt(fan_in)
        w = jax.random.uniform(kw, (fan_in, fan_out), jnp.float32, -bound, bound)
        b = jax.random.uniform(kb, (1, fan_out), jnp.float32, -bound, bound)
        return w, b

    w1, b1 = linear(ks[0], ks[1], IN_FEATURES, HIDDEN1)
    w2, b2 = linear(ks[2], ks[3], HIDDEN1, HIDDEN2)
    w3, b3 = linear(ks[4], ks[5], HIDDEN2, OUT_FEATURES)
    return dict(w1=w1, b1=b1, w2=w2, b2=b2, w3=w3, b3=b3)


def _reference(x, p):
    hi = lax.Precision.HIGHEST
    h1 = jax.nn.sigmoid(jnp.dot(x, p["w1"], precision=hi) + p["b1"])
    h2 = jnp.maximum(jnp.dot(h1, p["w2"], precision=hi) + p["b2"], 0.0)
    return jnp.dot(h2, p["w3"], precision=hi) + p["b3"]


if __name__ == "__main__":
    key = jax.random.PRNGKey(0)
    k_x, k_p = jax.random.split(key)

    B = 16  # small test batch; feature dim fixed at 4096 by the module
    x = jax.random.normal(k_x, (B, IN_FEATURES), jnp.float32)
    params = init_params(k_p)
    prepped = prepare_params(params)          # built once, reused across calls
    ref = _reference(x, params)

    # Kernel matmuls use the MXU's default (bf16-pass) precision with K=4096,
    # so compare against a HIGHEST-precision reference with matching tolerance.
    tol = dict(atol=1e-2, rtol=1e-2)

    # 1) Default config: >=2 grid steps (exercises megacore "parallel" sharding).
    out = jax.block_until_ready(simple_model_forward(x, prepped))
    assert out.shape == (B, OUT_FEATURES)
    assert jnp.allclose(out, ref, **tol), float(jnp.max(jnp.abs(out - ref)))

    # 2) Single-tile path (B small enough for one grid step).
    out2 = jax.block_until_ready(simple_model_forward(x[:8], prepped))
    assert jnp.allclose(out2, ref[:8], **tol)

    # 3) Ragged batch: partial last tile handled in-kernel, no host-side x copy.
    out3 = jax.block_until_ready(simple_model_forward(x[:13], prepped))
    assert out3.shape == (13, OUT_FEATURES)
    assert jnp.allclose(out3, ref[:13], **tol)

    # 4) bf16-x fast path (x arrives bf16 from the producer; w1 pre-cast once).
    prepped_bf16 = prepare_params(params, bf16_inputs=True)
    out4 = jax.block_until_ready(
        simple_model_forward(x.astype(jnp.bfloat16), prepped_bf16))
    assert out4.shape == (B, OUT_FEATURES)
    assert jnp.allclose(out4, ref, atol=5e-2, rtol=5e-2)

    print("KERNEL_OK")
</pallas_src>

<mosaic_0001>
module attributes {stable_mosaic.version = 11 : i64} {
  func.func @_mlp_kernel(%arg0: i32, %arg1: memref<8x4096xf32, #tpu.memory_space<vmem>>, %arg2: memref<4096x128xf32, #tpu.memory_space<vmem>>, %arg3: memref<1x128xf32, #tpu.memory_space<vmem>>, %arg4: memref<128x64xf32, #tpu.memory_space<vmem>>, %arg5: memref<1x64xf32, #tpu.memory_space<vmem>>, %arg6: memref<64x128xf32, #tpu.memory_space<vmem>>, %arg7: memref<1x128xf32, #tpu.memory_space<vmem>>, %arg8: memref<8x128xf32, #tpu.memory_space<vmem>>) attributes {dimension_semantics = [#tpu.dimension_semantics<parallel>], iteration_bounds = array<i64: 2>, scalar_prefetch = 0 : i64, scratch_operands = 0 : i64, tpu.core_type = #tpu.core_type<tc>, window_params = [{transform_indices = @transform_0, window_bounds = array<i64: 8, 4096>}, {pipeline_mode = #tpu.pipeline_mode<synchronous>, transform_indices = @transform_1, window_bounds = array<i64: 4096, 128>}, {pipeline_mode = #tpu.pipeline_mode<synchronous>, transform_indices = @transform_2, window_bounds = array<i64: 1, 128>}, {pipeline_mode = #tpu.pipeline_mode<synchronous>, transform_indices = @transform_3, window_bounds = array<i64: 128, 64>}, {pipeline_mode = #tpu.pipeline_mode<synchronous>, transform_indices = @transform_4, window_bounds = array<i64: 1, 64>}, {pipeline_mode = #tpu.pipeline_mode<synchronous>, transform_indices = @transform_5, window_bounds = array<i64: 64, 128>}, {pipeline_mode = #tpu.pipeline_mode<synchronous>, transform_indices = @transform_6, window_bounds = array<i64: 1, 128>}, {transform_indices = @transform_7, window_bounds = array<i64: 8, 128>}]} {
    %c0 = arith.constant 0 : index
    %c0_0 = arith.constant 0 : index
    %0 = vector.load %arg3[%c0, %c0_0] : memref<1x128xf32, #tpu.memory_space<vmem>>, vector<1x128xf32>
    %1 = vector.shape_cast %0 : vector<1x128xf32> to vector<1x128xf32>
    %2 = vector.broadcast %1 : vector<1x128xf32> to vector<8x128xf32>
    %c0_1 = arith.constant 0 : index
    %c0_2 = arith.constant 0 : index
    %3 = vector.load %arg5[%c0_1, %c0_2] : memref<1x64xf32, #tpu.memory_space<vmem>>, vector<1x64xf32>
    %4 = vector.shape_cast %3 : vector<1x64xf32> to vector<1x64xf32>
    %5 = vector.broadcast %4 : vector<1x64xf32> to vector<8x64xf32>
    %c0_3 = arith.constant 0 : index
    %c0_4 = arith.constant 0 : index
    %6 = vector.load %arg7[%c0_3, %c0_4] : memref<1x128xf32, #tpu.memory_space<vmem>>, vector<1x128xf32>
    %7 = vector.shape_cast %6 : vector<1x128xf32> to vector<1x128xf32>
    %8 = vector.broadcast %7 : vector<1x128xf32> to vector<8x128xf32>
    %c0_5 = arith.constant 0 : index
    %c0_6 = arith.constant 0 : index
    %9 = vector.load %arg4[%c0_5, %c0_6] : memref<128x64xf32, #tpu.memory_space<vmem>>, vector<128x64xf32>
    %c0_7 = arith.constant 0 : index
    %c0_8 = arith.constant 0 : index
    %10 = vector.load %arg6[%c0_7, %c0_8] : memref<64x128xf32, #tpu.memory_space<vmem>>, vector<64x128xf32>
    %c0_i32 = arith.constant 0 : i32
    %c8_i32 = arith.constant 8 : i32
    %11 = arith.muli %c0_i32, %c8_i32 : i32
    %12 = tpu.assume_multiple %11, 8 : i32
    %13 = arith.index_cast %12 : i32 to index
    %c0_9 = arith.constant 0 : index
    %14 = vector.load %arg1[%13, %c0_9] : memref<8x4096xf32, #tpu.memory_space<vmem>>, vector<8x4096xf32>
    %c0_10 = arith.constant 0 : index
    %c0_11 = arith.constant 0 : index
    %15 = vector.load %arg2[%c0_10, %c0_11] : memref<4096x128xf32, #tpu.memory_space<vmem>>, vector<4096x128xf32>
    %cst = arith.constant dense<0.000000e+00> : vector<8x128xf32>
    %16 = tpu.matmul %14, %15, %cst {dimension_numbers = #tpu.dot_dimension_numbers<[1], [0], [0], [1], [0, 0, 1, 1], [], []>} : vector<8x4096xf32>, vector<4096x128xf32>, vector<8x128xf32> -> vector<8x128xf32>
    %17 = arith.addf %16, %2 : vector<8x128xf32>
    %18 = arith.negf %17 : vector<8x128xf32>
    %19 = math.exp %18 : vector<8x128xf32>
    %cst_12 = arith.constant 1.000000e+00 : f32
    %20 = vector.broadcast %cst_12 : f32 to vector<8x128xf32>
    %21 = arith.addf %20, %19 : vector<8x128xf32>
    %22 = arith.divf %20, %21 : vector<8x128xf32>
    %cst_13 = arith.constant dense<0.000000e+00> : vector<8x64xf32>
    %23 = tpu.matmul %22, %9, %cst_13 {dimension_numbers = #tpu.dot_dimension_numbers<[1], [0], [0], [1], [0, 0, 1, 1], [], []>} : vector<8x128xf32>, vector<128x64xf32>, vector<8x64xf32> -> vector<8x64xf32>
    %24 = arith.addf %23, %5 : vector<8x64xf32>
    %cst_14 = arith.constant 0.000000e+00 : f32
    %25 = vector.broadcast %cst_14 : f32 to vector<8x64xf32>
    %26 = arith.maximumf %24, %25 : vector<8x64xf32>
    %cst_15 = arith.constant dense<0.000000e+00> : vector<8x128xf32>
    %27 = tpu.matmul %26, %10, %cst_15 {dimension_numbers = #tpu.dot_dimension_numbers<[1], [0], [0], [1], [0, 0, 1, 1], [], []>} : vector<8x64xf32>, vector<64x128xf32>, vector<8x128xf32> -> vector<8x128xf32>
    %28 = arith.addf %27, %8 : vector<8x128xf32>
    %29 = arith.index_cast %12 : i32 to index
    %c0_16 = arith.constant 0 : index
    %30 = vector.load %arg8[%29, %c0_16] : memref<8x128xf32, #tpu.memory_space<vmem>>, vector<8x128xf32>
    tpu.vector_store %arg8[%29, %c0_16], %28 {strides = array<i32>} : memref<8x128xf32, #tpu.memory_space<vmem>>, vector<8x128xf32>,
    %c1_i32 = arith.constant 1 : i32
    return
  }
  func.func @transform_0(%arg0: i32) -> (i32, i32) {
    %c0_i32 = arith.constant 0 : i32
    %c0_i32_0 = arith.constant 0 : i32
    return %arg0, %c0_i32 : i32, i32
  }
  func.func @transform_1(%arg0: i32) -> (i32, i32) {
    %c0_i32 = arith.constant 0 : i32
    %c0_i32_0 = arith.constant 0 : i32
    %c0_i32_1 = arith.constant 0 : i32
    return %c0_i32, %c0_i32_0 : i32, i32
  }
  func.func @transform_2(%arg0: i32) -> (i32, i32) {
    %c0_i32 = arith.constant 0 : i32
    %c0_i32_0 = arith.constant 0 : i32
    %c0_i32_1 = arith.constant 0 : i32
    return %c0_i32, %c0_i32_0 : i32, i32
  }
  func.func @transform_3(%arg0: i32) -> (i32, i32) {
    %c0_i32 = arith.constant 0 : i32
    %c0_i32_0 = arith.constant 0 : i32
    %c0_i32_1 = arith.constant 0 : i32
    return %c0_i32, %c0_i32_0 : i32, i32
  }
  func.func @transform_4(%arg0: i32) -> (i32, i32) {
    %c0_i32 = arith.constant 0 : i32
    %c0_i32_0 = arith.constant 0 : i32
    %c0_i32_1 = arith.constant 0 : i32
    return %c0_i32, %c0_i32_0 : i32, i32
  }
  func.func @transform_5(%arg0: i32) -> (i32, i32) {
    %c0_i32 = arith.constant 0 : i32
    %c0_i32_0 = arith.constant 0 : i32
    %c0_i32_1 = arith.constant 0 : i32
    return %c0_i32, %c0_i32_0 : i32, i32
  }
  func.func @transform_6(%arg0: i32) -> (i32, i32) {
    %c0_i32 = arith.constant 0 : i32
    %c0_i32_0 = arith.constant 0 : i32
    %c0_i32_1 = arith.constant 0 : i32
    return %c0_i32, %c0_i32_0 : i32, i32
  }
  func.func @transform_7(%arg0: i32) -> (i32, i32) {
    %c0_i32 = arith.constant 0 : i32
    %c0_i32_0 = arith.constant 0 : i32
    return %arg0, %c0_i32 : i32, i32
  }
}

</mosaic_0001>

<llo_original>
// kernel: _forward_impl.1
$region0: #{_forward_impl.1}
  #allocation0 [shape = 'u32[]', space=smem, size = 0x4, offset = 0x4, fixed_abs, tag = 'smem constant byte address 0x4 - core index']
  #allocation1 [shape = 'u32[144,128]{1,0:T(1,128)}', space=vmem, size = 0x12000, scoped, tag = 'internal scratch']
  %s0 = inlined_call_operand.hbm [shape: f32[16,4096], index: 0, kind: input, shape index: {}]
  %s1 = inlined_call_operand.hbm [shape: f32[4096,128], index: 1, kind: input, shape index: {}]
  %s2 = inlined_call_operand.hbm [shape: f32[1,128], index: 2, kind: input, shape index: {}]
  %s3 = inlined_call_operand.vmem [shape: f32[128,64], index: 3, kind: input, shape index: {}]
  %s4 = inlined_call_operand.hbm [shape: f32[1,64], index: 4, kind: input, shape index: {}]
  %s5 = inlined_call_operand.hbm [shape: f32[64,128], index: 5, kind: input, shape index: {}]
  %s6 = inlined_call_operand.hbm [shape: f32[1,128], index: 6, kind: input, shape index: {}]
  %s7 = inlined_call_operand.hbm [shape: f32[16,128], index: 7, kind: output, shape index: {}]
  %s8 = sld [smem:[#allocation0]]
  $region85: #{_forward_impl.1} parent=0
    _
  %s10 = ssub.s32 1, %s8
  %s11 = scalar_select 0, %s10, %s8
  $region1: #{_forward_impl.1} parent=0
    #allocation2 [shape = 'u8[262144]{0}', space=vmem, size = 0x40000, scoped, tag = 'input window, operand 0']
    #allocation3 [shape = 's32[2]{0}', space=sflag, size = 0x8, scoped, tag = 'scoped memory for _forward_impl.1']
    #allocation4 [shape = 's32[2]{0}', space=sflag, size = 0x8, scoped, tag = 'scoped memory for _forward_impl.1']
    #allocation5 [shape = 'u8[2097152]{0}', space=vmem, size = 0x200000, scoped, tag = 'input window, operand 1, single buffered']
    #allocation6 [shape = 's32[1]{0}', space=sflag, size = 0x4, scoped, tag = 'scoped memory for _forward_impl.1']
    #allocation7 [shape = 'u8[512]{0}', space=vmem, size = 0x400, scoped, tag = 'input window, operand 2, single buffered']
    #allocation8 [shape = 'u8[512]{0}', space=vmem, size = 0x400, scoped, tag = 'input window, operand 4, single buffered']
    #allocation9 [shape = 's32[1]{0}', space=sflag, size = 0x4, scoped, tag = 'scoped memory for _forward_impl.1']
    #allocation10 [shape = 'u8[32768]{0}', space=vmem, size = 0x8000, scoped, tag = 'input window, operand 5, single buffered']
    #allocation11 [shape = 'u8[512]{0}', space=vmem, size = 0x400, scoped, tag = 'input window, operand 6, single buffered']
    #allocation12 [shape = 's32[1]{0}', space=sflag, size = 0x4, scoped, tag = 'scoped memory for _forward_impl.1']
    #allocation13 [shape = 'u8[8192]{0}', space=vmem, size = 0x2000, scoped, tag = 'output window, operand 0']
    %12 = vsyncpa [#allocation3], 0
    %s13 = scalar_lea.sflag [#allocation3], 1
    %14 = vsyncpa %s13, 0
    %15 = vsyncpa [#allocation6], 0
    %16 = vsyncpa [#allocation9], 0
    %17 = vsyncpa [#allocation12], 0
    %18 = vsyncpa [#allocation4], 0
    %s19 = scalar_lea.sflag [#allocation4], 1
    %20 = vsyncpa %s19, 0
    loop: start=0, step=1, limit=4
    $region2: #{_forward_impl.1} parent=1 // loop_pre_header
      _
    $region3: #{_forward_impl.1} parent=1 // loop_header
      %s22 = sphi 0, %s26
      %p23 = scmp.ge.s32.totalorder %s22, 4
      %s32 = sphi 0, %s34
      %s35 = sphi 0, %s32
      %s36 = sphi 0, %s35
      %s52 = sphi 0, %s36
      %s56 = sphi 0, %s56
      %s58 = sphi 0, %s56
      %s59 = sphi 0, %s58
      %s73 = sphi 0, %s59
      %s77 = sphi 0, %s77
      %s79 = sphi 0, %s77
      %s80 = sphi 0, %s79
      %s94 = sphi 0, %s80
      %s98 = sphi 0, %s98
      %s100 = sphi 0, %s98
      %s101 = sphi 0, %s100
      %s115 = sphi 0, %s101
      %s119 = sphi 0, %s119
      %s121 = sphi 0, %s119
      %s122 = sphi 0, %s121
      %s136 = sphi 0, %s122
      %s140 = sphi 0, %s140
      %s142 = sphi 0, %s140
      %s143 = sphi 0, %s142
      %s157 = sphi 0, %s143
      %s161 = sphi 0, %s161
      %s163 = sphi 0, %s161
      %s164 = sphi 0, %s163
      %s178 = sphi 0, %s164
      %s184 = sphi 0, %s186
      %s187 = sphi 0, %s184
      %s188 = sphi 0, %s187
      %s204 = sphi 0, %s188
    $region4: #{_forward_impl.1} parent=1 // loop_header_branch
      %25 = sbr.rel (%p23) target = $region8
    $region5: #{_forward_impl.1} parent=1 // loop_body
      %s27 = ssub.s32 %s22, 1
      %s28 = ssub.s32 %s22, 2
      %s29 = sadd.s32 %s22, 1
      %s30 = ssub.s32 %s22, %s29
      %p31 = scmp.eq.s32.totalorder %s30, 0
      %s33 = sadd.s32 %s32, 1
      %s34 = scalar_select %p31, %s32, %s33
      %p37 = pneg %p31
      %p38 = scmp.eq.s32.totalorder %s22, 1
      %p39 = por %p37, %p38
      %p40 = scmp.ne.s32.totalorder %s32, %s35
      %p41 = scmp.eq.s32.totalorder %s22, 0
      %p42 = por %p40, %p41
      %p43 = scmp.ne.s32.totalorder %s32, %s35
      %p44 = scmp.eq.s32.totalorder %s27, 1
      %p45 = por %p43, %p44
      %p46 = scmp.ne.s32.totalorder %s35, %s36
      %p47 = scmp.eq.s32.totalorder %s27, 0
      %p48 = por %p46, %p47
      %p49 = scmp.ne.s32.totalorder %s35, %s36
      %p50 = scmp.eq.s32.totalorder %s28, 1
      %p51 = por %p49, %p50
      %p53 = scmp.ne.s32.totalorder %s36, %s52
      %p54 = scmp.eq.s32.totalorder %s28, 0
      %p55 = por %p53, %p54
      %s57 = sadd.s32 %s56, 1
      %p60 = scmp.eq.s32.totalorder %s22, 1
      %p61 = scmp.ne.s32.totalorder %s56, %s58
      %p62 = scmp.eq.s32.totalorder %s22, 0
      %p63 = por %p61, %p62
      %p64 = scmp.ne.s32.totalorder %s56, %s58
      %p65 = scmp.eq.s32.totalorder %s27, 1
      %p66 = por %p64, %p65
      %p67 = scmp.ne.s32.totalorder %s58, %s59
      %p68 = scmp.eq.s32.totalorder %s27, 0
      %p69 = por %p67, %p68
      %p70 = scmp.ne.s32.totalorder %s58, %s59
      %p71 = scmp.eq.s32.totalorder %s28, 1
      %p72 = por %p70, %p71
      %p74 = scmp.ne.s32.totalorder %s59, %s73
      %p75 = scmp.eq.s32.totalorder %s28, 0
      %p76 = por %p74, %p75
      %s78 = sadd.s32 %s77, 1
      %p81 = scmp.eq.s32.totalorder %s22, 1
      %p82 = scmp.ne.s32.totalorder %s77, %s79
      %p83 = scmp.eq.s32.totalorder %s22, 0
      %p84 = por %p82, %p83
      %p85 = scmp.ne.s32.totalorder %s77, %s79
      %p86 = scmp.eq.s32.totalorder %s27, 1
      %p87 = por %p85, %p86
      %p88 = scmp.ne.s32.totalorder %s79, %s80
      %p89 = scmp.eq.s32.totalorder %s27, 0
      %p90 = por %p88, %p89
      %p91 = scmp.ne.s32.totalorder %s79, %s80
      %p92 = scmp.eq.s32.totalorder %s28, 1
      %p93 = por %p91, %p92
      %p95 = scmp.ne.s32.totalorder %s80, %s94
      %p96 = scmp.eq.s32.totalorder %s28, 0
      %p97 = por %p95, %p96
      %s99 = sadd.s32 %s98, 1
      %p102 = scmp.eq.s32.totalorder %s22, 1
      %p103 = scmp.ne.s32.totalorder %s98, %s100
      %p104 = scmp.eq.s32.totalorder %s22, 0
      %p105 = por %p103, %p104
      %p106 = scmp.ne.s32.totalorder %s98, %s100
      %p107 = scmp.eq.s32.totalorder %s27, 1
      %p108 = por %p106, %p107
      %p109 = scmp.ne.s32.totalorder %s100, %s101
      %p110 = scmp.eq.s32.totalorder %s27, 0
      %p111 = por %p109, %p110
      %p112 = scmp.ne.s32.totalorder %s100, %s101
      %p113 = scmp.eq.s32.totalorder %s28, 1
      %p114 = por %p112, %p113
      %p116 = scmp.ne.s32.totalorder %s101, %s115
      %p117 = scmp.eq.s32.totalorder %s28, 0
      %p118 = por %p116, %p117
      %s120 = sadd.s32 %s119, 1
      %p123 = scmp.eq.s32.totalorder %s22, 1
      %p124 = scmp.ne.s32.totalorder %s119, %s121
      %p125 = scmp.eq.s32.totalorder %s22, 0
      %p126 = por %p124, %p125
      %p127 = scmp.ne.s32.totalorder %s119, %s121
      %p128 = scmp.eq.s32.totalorder %s27, 1
      %p129 = por %p127, %p128
      %p130 = scmp.ne.s32.totalorder %s121, %s122
      %p131 = scmp.eq.s32.totalorder %s27, 0
      %p132 = por %p130, %p131
      %p133 = scmp.ne.s32.totalorder %s121, %s122
      %p134 = scmp.eq.s32.totalorder %s28, 1
      %p135 = por %p133, %p134
      %p137 = scmp.ne.s32.totalorder %s122, %s136
      %p138 = scmp.eq.s32.totalorder %s28, 0
      %p139 = por %p137, %p138
      %s141 = sadd.s32 %s140, 1
      %p144 = scmp.eq.s32.totalorder %s22, 1
      %p145 = scmp.ne.s32.totalorder %s140, %s142
      %p146 = scmp.eq.s32.totalorder %s22, 0
      %p147 = por %p145, %p146
      %p148 = scmp.ne.s32.totalorder %s140, %s142
      %p149 = scmp.eq.s32.totalorder %s27, 1
      %p150 = por %p148, %p149
      %p151 = scmp.ne.s32.totalorder %s142, %s143
      %p152 = scmp.eq.s32.totalorder %s27, 0
      %p153 = por %p151, %p152
      %p154 = scmp.ne.s32.totalorder %s142, %s143
      %p155 = scmp.eq.s32.totalorder %s28, 1
      %p156 = por %p154, %p155
      %p158 = scmp.ne.s32.totalorder %s143, %s157
      %p159 = scmp.eq.s32.totalorder %s28, 0
      %p160 = por %p158, %p159
      %s162 = sadd.s32 %s161, 1
      %p165 = scmp.eq.s32.totalorder %s22, 1
      %p166 = scmp.ne.s32.totalorder %s161, %s163
      %p167 = scmp.eq.s32.totalorder %s22, 0
      %p168 = por %p166, %p167
      %p169 = scmp.ne.s32.totalorder %s161, %s163
      %p170 = scmp.eq.s32.totalorder %s27, 1
      %p171 = por %p169, %p170
      %p172 = scmp.ne.s32.totalorder %s163, %s164
      %p173 = scmp.eq.s32.totalorder %s27, 0
      %p174 = por %p172, %p173
      %p175 = scmp.ne.s32.totalorder %s163, %s164
      %p176 = scmp.eq.s32.totalorder %s28, 1
      %p177 = por %p175, %p176
      %p179 = scmp.ne.s32.totalorder %s164, %s178
      %p180 = scmp.eq.s32.totalorder %s28, 0
      %p181 = por %p179, %p180
      %s182 = ssub.s32 %s22, %s29
      %p183 = scmp.eq.s32.totalorder %s182, 0
      %s185 = sadd.s32 %s184, 1
      %s186 = scalar_select %p183, %s184, %s185
      %p189 = pneg %p183
      %p190 = scmp.eq.s32.totalorder %s22, 1
      %p191 = por %p189, %p190
      %p192 = scmp.ne.s32.totalorder %s184, %s187
      %p193 = scmp.eq.s32.totalorder %s22, 0
      %p194 = por %p192, %p193
      %p195 = scmp.ne.s32.totalorder %s184, %s187
      %p196 = scmp.eq.s32.totalorder %s27, 1
      %p197 = por %p195, %p196
      %p198 = scmp.ne.s32.totalorder %s187, %s188
      %p199 = scmp.eq.s32.totalorder %s27, 0
      %p200 = por %p198, %p199
      %p201 = scmp.ne.s32.totalorder %s187, %s188
      %p202 = scmp.eq.s32.totalorder %s28, 1
      %p203 = por %p201, %p202
      %p205 = scmp.ne.s32.totalorder %s188, %s204
      %p206 = scmp.eq.s32.totalorder %s28, 0
      %p207 = por %p205, %p206
      %p208 = scmp.le.s32.totalorder 1, %s22
      %p209 = scmp.lt.s32.totalorder %s22, 3
      %p210 = pnand %p208, %p209
      %p211 = pneg %p210
      // Predicated region
      $region9: #{_forward_impl.1} parent=5 // pred_check
        _
      $region10: #{_forward_impl.1} parent=5 // pred_check_branch
        %213 = sbr.rel (%p210) target = $region12
      $region11: #{_forward_impl.1} parent=5 // pred_region
        %s214 = ssub.s32 %s22, 1
        // Predicated region
        $region13: #{_forward_impl.1} parent=11 // pred_check
          %p215 = pneg %p69
        $region14: #{_forward_impl.1} parent=11 // pred_check_branch
          %217 = sbr.rel (%p215) target = $region16
        $region15: #{_forward_impl.1} parent=11 // pred_region
          %s219 = ssub.s32 65536, 65536
          %220 = vsyncadd [#allocation6], %s219
          %s221 = sshll.u32 [#allocation5], 4
          %s222 = int_to_ptr.vmem [resolvable:$true] %s221
          %227 = dma.hbm_to_vmem [thread:$0]  %s1, 65536, %s222, [#allocation6], 128, 128, 8
        $region16: #{_forward_impl.1} parent=11 // pred_fallthru
          _
        // Predicated region
        $region17: #{_forward_impl.1} parent=11 // pred_check
          %p228 = pneg %p90
        $region18: #{_forward_impl.1} parent=11 // pred_check_branch
          %230 = sbr.rel (%p228) target = $region20
        $region19: #{_forward_impl.1} parent=11 // pred_region
          %s232 = ssub.s32 16, 16
          %233 = vsyncadd [#allocation6], %s232
          %s235 = sshll.u32 [#allocation7], 4
          %s236 = int_to_ptr.vmem [resolvable:$true] %s235
          %238 = dma.hbm_to_vmem [thread:$0]  %s2, 16, %s236, [#allocation6]
        $region20: #{_forward_impl.1} parent=11 // pred_fallthru
          _
        // Predicated region
        $region21: #{_forward_impl.1} parent=11 // pred_check
          %p239 = pneg %p111
        $region22: #{_forward_impl.1} parent=11 // pred_check_branch
          %241 = sbr.rel (%p239) target = $region24
        $region23: #{_forward_impl.1} parent=11 // pred_region
          _
        $region24: #{_forward_impl.1} parent=11 // pred_fallthru
          _
        // Predicated region
        $region25: #{_forward_impl.1} parent=11 // pred_check
          %p242 = pneg %p132
        $region26: #{_forward_impl.1} parent=11 // pred_check_branch
          %244 = sbr.rel (%p242) target = $region28
        $region27: #{_forward_impl.1} parent=11 // pred_region
          %s246 = ssub.s32 16, 16
          %247 = vsyncadd [#allocation9], %s246
          %s249 = sshll.u32 [#allocation8], 4
          %s250 = int_to_ptr.vmem [resolvable:$true] %s249
          %252 = dma.hbm_to_vmem [thread:$0]  %s4, 16, %s250, [#allocation9]
        $region28: #{_forward_impl.1} parent=11 // pred_fallthru
          _
        // Predicated region
        $region29: #{_forward_impl.1} parent=11 // pred_check
          %p253 = pneg %p153
        $region30: #{_forward_impl.1} parent=11 // pred_check_branch
          %255 = sbr.rel (%p253) target = $region32
        $region31: #{_forward_impl.1} parent=11 // pred_region
          %s257 = ssub.s32 1024, 1024
          %258 = vsyncadd [#allocation9], %s257
          %s259 = sshll.u32 [#allocation10], 4
          %s260 = int_to_ptr.vmem [resolvable:$true] %s259
          %265 = dma.hbm_to_vmem [thread:$0]  %s5, 1024, %s260, [#allocation9], 128, 128, 8
        $region32: #{_forward_impl.1} parent=11 // pred_fallthru
          _
        // Predicated region
        $region33: #{_forward_impl.1} parent=11 // pred_check
          %p266 = pneg %p174
        $region34: #{_forward_impl.1} parent=11 // pred_check_branch
          %268 = sbr.rel (%p266) target = $region36
        $region35: #{_forward_impl.1} parent=11 // pred_region
          %s270 = ssub.s32 16, 16
          %271 = vsyncadd [#allocation12], %s270
          %s273 = sshll.u32 [#allocation11], 4
          %s274 = int_to_ptr.vmem [resolvable:$true] %s273
          %276 = dma.hbm_to_vmem [thread:$0]  %s6, 16, %s274, [#allocation12]
        $region36: #{_forward_impl.1} parent=11 // pred_fallthru
          _
      $region12: #{_forward_impl.1} parent=5 // pred_fallthru
        _
      %p277 = scmp.lt.s32.totalorder %s22, 2
      // Predicated region
      $region37: #{_forward_impl.1} parent=5 // pred_check
        %p278 = pneg %p277
      $region38: #{_forward_impl.1} parent=5 // pred_check_branch
        %280 = sbr.rel (%p278) target = $region40
      $region39: #{_forward_impl.1} parent=5 // pred_region
        // Predicated region
        $region41: #{_forward_impl.1} parent=39 // pred_check
          %p281 = pneg %p42
        $region42: #{_forward_impl.1} parent=39 // pred_check_branch
          %283 = sbr.rel (%p281) target = $region44
        $region43: #{_forward_impl.1} parent=39 // pred_region
          %s284 = sand.u32 %s32, 1
          %s285 = scalar_lea.sflag [#allocation3], %s284
          %s286 = sand.u32 %s32, 1
          %s287 = smul.addr %s286, 256
          %s288 = scalar_lea.vmem [#allocation2], %s287
          %s290 = ssub.s32 4096, 4096
          %291 = vsyncadd %s285, %s290
          %s292 = smul.addr %s22, 32
          %s293 = smul.addr %s292, 128
          %s294 = scalar_lea.hbm %s0, %s293
          %s296 = sshll.u32 %s288, 4
          %s297 = int_to_ptr.vmem [resolvable:$true] %s296
          %299 = dma.hbm_to_vmem [thread:$0]  %s294, 4096, %s297, %s285
        $region44: #{_forward_impl.1} parent=39 // pred_fallthru
          _
      $region40: #{_forward_impl.1} parent=5 // pred_fallthru
        _
      %p300 = scmp.le.s32.totalorder 1, %s22
      %p301 = scmp.lt.s32.totalorder %s22, 3
      %p302 = pnand %p300, %p301
      %p303 = pneg %p302
      // Predicated region
      $region45: #{_forward_impl.1} parent=5 // pred_check
        _
      $region46: #{_forward_impl.1} parent=5 // pred_check_branch
        %305 = sbr.rel (%p302) target = $region48
      $region47: #{_forward_impl.1} parent=5 // pred_region
        %s306 = ssub.s32 %s22, 1
        %s307 = sand.u32 %s35, 1
        %s308 = scalar_lea.sflag [#allocation3], %s307
        %s309 = sand.u32 %s35, 1
        %s310 = smul.addr %s309, 256
        %s311 = scalar_lea.vmem [#allocation2], %s310
        // Predicated region
        $region49: #{_forward_impl.1} parent=47 // pred_check
          %p312 = pneg %p48
        $region50: #{_forward_impl.1} parent=47 // pred_check_branch
          %314 = sbr.rel (%p312) target = $region52
        $region51: #{_forward_impl.1} parent=47 // pred_region
          %315 = dma.done %s308, 4096
        $region52: #{_forward_impl.1} parent=47 // pred_fallthru
          _
        // Predicated region
        $region53: #{_forward_impl.1} parent=47 // pred_check
          %p316 = pneg %p69
        $region54: #{_forward_impl.1} parent=47 // pred_check_branch
          %318 = sbr.rel (%p316) target = $region56
        $region55: #{_forward_impl.1} parent=47 // pred_region
          %319 = dma.done [#allocation6], 65536
        $region56: #{_forward_impl.1} parent=47 // pred_fallthru
          _
        // Predicated region
        $region57: #{_forward_impl.1} parent=47 // pred_check
          %p320 = pneg %p90
        $region58: #{_forward_impl.1} parent=47 // pred_check_branch
          %322 = sbr.rel (%p320) target = $region60
        $region59: #{_forward_impl.1} parent=47 // pred_region
          %323 = dma.done [#allocation6], 16
        $region60: #{_forward_impl.1} parent=47 // pred_fallthru
          _
        // Predicated region
        $region61: #{_forward_impl.1} parent=47 // pred_check
          %p324 = pneg %p132
        $region62: #{_forward_impl.1} parent=47 // pred_check_branch
          %326 = sbr.rel (%p324) target = $region64
        $region63: #{_forward_impl.1} parent=47 // pred_region
          %327 = dma.done [#allocation9], 16
        $region64: #{_forward_impl.1} parent=47 // pred_fallthru
          _
        // Predicated region
        $region65: #{_forward_impl.1} parent=47 // pred_check
          %p328 = pneg %p153
        $region66: #{_forward_impl.1} parent=47 // pred_check_branch
          %330 = sbr.rel (%p328) target = $region68
        $region67: #{_forward_impl.1} parent=47 // pred_region
          %331 = dma.done [#allocation9], 1024
        $region68: #{_forward_impl.1} parent=47 // pred_fallthru
          _
        // Predicated region
        $region69: #{_forward_impl.1} parent=47 // pred_check
          %p332 = pneg %p174
        $region70: #{_forward_impl.1} parent=47 // pred_check_branch
          %334 = sbr.rel (%p332) target = $region72
        $region71: #{_forward_impl.1} parent=47 // pred_region
          %335 = dma.done [#allocation12], 16
        $region72: #{_forward_impl.1} parent=47 // pred_fallthru
          _
        %s336 = sand.u32 %s35, 1
        %s337 = scalar_lea.sflag [#allocation3], %s336
        %s338 = sand.u32 %s35, 1
        %s339 = smul.addr %s338, 256
        %s340 = scalar_lea.vmem [#allocation2], %s339
        %p341 = pneg %p48
        %p342 = pneg %p45
        %p343 = pneg %p69
        %p344 = pneg %p66
        %p345 = pneg %p90
        %p346 = pneg %p87
        %p347 = pneg %p111
        %p348 = pneg %p108
        %p349 = pneg %p132
        %p350 = pneg %p129
        %p351 = pneg %p153
        %p352 = pneg %p150
        %p353 = pneg %p174
        %p354 = pneg %p171
        %p355 = pneg %p200
        %p356 = pneg %p197
        %s357 = sand.u32 %s187, 1
        %s358 = scalar_lea.sflag [#allocation4], %s357
        %s359 = sand.u32 %s187, 1
        %s360 = smul.addr %s359, 8
        %s361 = scalar_lea.vmem [#allocation13], %s360
        %v362 = vld [vmem:[#allocation7] sm:$0x1]
        %v364 = vlaneseq
        %v365 = vshrl.u32 %v364, 7
        %v366 = vsub.s32 0, %v365
        %v367 = vrot.slane %v362, %v366
        %v369 = vld [vmem:[#allocation8] sm:$0x1]
        %v371 = vlaneseq
        %v372 = vshrl.u32 %v371, 7
        %v373 = vsub.s32 0, %v372
        %v374 = vrot.slane %v369, %v373
        %v376 = vld [vmem:[#allocation11] sm:$0x1]
        %v378 = vlaneseq
        %v379 = vshrl.u32 %v378, 7
        %v380 = vsub.s32 0, %v379
        %v381 = vrot.slane %v376, %v380
        %v383 = vld [vmem:[%s3] sm:$0xff]
        %v384 = vld [vmem:[%s3 + $0x8] sm:$0xff]
        %v385 = vld [vmem:[%s3 + $0x10] sm:$0xff]
        %v386 = vld [vmem:[%s3 + $0x18] sm:$0xff]
        %v387 = vld [vmem:[%s3 + $0x20] sm:$0xff]
        %v388 = vld [vmem:[%s3 + $0x28] sm:$0xff]
        %v389 = vld [vmem:[%s3 + $0x30] sm:$0xff]
        %v390 = vld [vmem:[%s3 + $0x38] sm:$0xff]
        %v391 = vld [vmem:[%s3 + $0x40] sm:$0xff]
        %v392 = vld [vmem:[%s3 + $0x48] sm:$0xff]
        %v393 = vld [vmem:[%s3 + $0x50] sm:$0xff]
        %v394 = vld [vmem:[%s3 + $0x58] sm:$0xff]
        %v395 = vld [vmem:[%s3 + $0x60] sm:$0xff]
        %v396 = vld [vmem:[%s3 + $0x68] sm:$0xff]
        %v397 = vld [vmem:[%s3 + $0x70] sm:$0xff]
        %v398 = vld [vmem:[%s3 + $0x78] sm:$0xff]
        %v399 = vld [vmem:[#allocation10] sm:$0xff]
        %v400 = vld [vmem:[#allocation10 + $0x8] sm:$0xff]
        %v401 = vld [vmem:[#allocation10 + $0x10] sm:$0xff]
        %v402 = vld [vmem:[#allocation10 + $0x18] sm:$0xff]
        %v403 = vld [vmem:[#allocation10 + $0x20] sm:$0xff]
        %v404 = vld [vmem:[#allocation10 + $0x28] sm:$0xff]
        %v405 = vld [vmem:[#allocation10 + $0x30] sm:$0xff]
        %v406 = vld [vmem:[#allocation10 + $0x38] sm:$0xff]
        %s407 = smul.u32 0, 32
        %s408 = smul.addr %s407, 8
        %s409 = scalar_lea.vmem %s311, %s408 [#allocation2]
        %v410 = vld [vmem:[%s409] sm:$0xff]
        %v411 = vld [vmem:[%s409 + $0x8] sm:$0xff]
        %v412 = vld [vmem:[%s409 + $0x10] sm:$0xff]
        %v413 = vld [vmem:[%s409 + $0x18] sm:$0xff]
        %v414 = vld [vmem:[%s409 + $0x20] sm:$0xff]
        %v415 = vld [vmem:[%s409 + $0x28] sm:$0xff]
        %v416 = vld [vmem:[%s409 + $0x30] sm:$0xff]
        %v417 = vld [vmem:[%s409 + $0x38] sm:$0xff]
        %v418 = vld [vmem:[%s409 + $0x40] sm:$0xff]
        %v419 = vld [vmem:[%s409 + $0x48] sm:$0xff]
        %v420 = vld [vmem:[%s409 + $0x50] sm:$0xff]
        %v421 = vld [vmem:[%s409 + $0x58] sm:$0xff]
        %v422 = vld [vmem:[%s409 + $0x60] sm:$0xff]
        %v423 = vld [vmem:[%s409 + $0x68] sm:$0xff]
        %v424 = vld [vmem:[%s409 + $0x70] sm:$0xff]
        %v425 = vld [vmem:[%s409 + $0x78] sm:$0xff]
        %v426 = vld [vmem:[%s409 + $0x80] sm:$0xff]
        %v427 = vld [vmem:[%s409 + $0x88] sm:$0xff]
        %v428 = vld [vmem:[%s409 + $0x90] sm:$0xff]
        %v429 = vld [vmem:[%s409 + $0x98] sm:$0xff]
        %v430 = vld [vmem:[%s409 + $0xa0] sm:$0xff]
        %v431 = vld [vmem:[%s409 + $0xa8] sm:$0xff]
        %v432 = vld [vmem:[%s409 + $0xb0] sm:$0xff]
        %v433 = vld [vmem:[%s409 + $0xb8] sm:$0xff]
        %v434 = vld [vmem:[%s409 + $0xc0] sm:$0xff]
        %v435 = vld [vmem:[%s409 + $0xc8] sm:$0xff]
        %v436 = vld [vmem:[%s409 + $0xd0] sm:$0xff]
        %v437 = vld [vmem:[%s409 + $0xd8] sm:$0xff]
        %v438 = vld [vmem:[%s409 + $0xe0] sm:$0xff]
        %v439 = vld [vmem:[%s409 + $0xe8] sm:$0xff]
        %v440 = vld [vmem:[%s409 + $0xf0] sm:$0xff]
        %v441 = vld [vmem:[%s409 + $0xf8] sm:$0xff]
        %v442 = vld [vmem:[#allocation5] sm:$0xff]
        %v443 = vld [vmem:[#allocation5 + $0x8] sm:$0xff]
        %v444 = vld [vmem:[#allocation5 + $0x10] sm:$0xff]
        %v445 = vld [vmem:[#allocation5 + $0x18] sm:$0xff]
        %v446 = vld [vmem:[#allocation5 + $0x20] sm:$0xff]
        %v447 = vld [vmem:[#allocation5 + $0x28] sm:$0xff]
        %v448 = vld [vmem:[#allocation5 + $0x30] sm:$0xff]
        %v449 = vld [vmem:[#allocation5 + $0x38] sm:$0xff]
        %v450 = vld [vmem:[#allocation5 + $0x40] sm:$0xff]
        %v451 = vld [vmem:[#allocation5 + $0x48] sm:$0xff]
        %v452 = vld [vmem:[#allocation5 + $0x50] sm:$0xff]
        %v453 = vld [vmem:[#allocation5 + $0x58] sm:$0xff]
        %v454 = vld [vmem:[#allocation5 + $0x60] sm:$0xff]
        %v455 = vld [vmem:[#allocation5 + $0x68] sm:$0xff]
        %v456 = vld [vmem:[#allocation5 + $0x70] sm:$0xff]
        %v457 = vld [vmem:[#allocation5 + $0x78] sm:$0xff]
        %v458 = vld [vmem:[#allocation5 + $0x80] sm:$0xff]
        %v459 = vld [vmem:[#allocation5 + $0x88] sm:$0xff]
        %v460 = vld [vmem:[#allocation5 + $0x90] sm:$0xff]
        %v461 = vld [vmem:[#allocation5 + $0x98] sm:$0xff]
        %v462 = vld [vmem:[#allocation5 + $0xa0] sm:$0xff]
        %v463 = vld [vmem:[#allocation5 + $0xa8] sm:$0xff]
        %v464 = vld [vmem:[#allocation5 + $0xb0] sm:$0xff]
        %v465 = vld [vmem:[#allocation5 + $0xb8] sm:$0xff]
        %v466 = vld [vmem:[#allocation5 + $0xc0] sm:$0xff]
        %v467 = vld [vmem:[#allocation5 + $0xc8] sm:$0xff]
        %v468 = vld [vmem:[#allocation5 + $0xd0] sm:$0xff]
        %v469 = vld [vmem:[#allocation5 + $0xd8] sm:$0xff]
        %v470 = vld [vmem:[#allocation5 + $0xe0] sm:$0xff]
        %v471 = vld [vmem:[#allocation5 + $0xe8] sm:$0xff]
        %v472 = vld [vmem:[#allocation5 + $0xf0] sm:$0xff]
        %v473 = vld [vmem:[#allocation5 + $0xf8] sm:$0xff]
        %v474 = vld [vmem:[#allocation5 + $0x100] sm:$0xff]
        %v475 = vld [vmem:[#allocation5 + $0x108] sm:$0xff]
        %v476 = vld [vmem:[#allocation5 + $0x110] sm:$0xff]
        %v477 = vld [vmem:[#allocation5 + $0x118] sm:$0xff]
        %v478 = vld [vmem:[#allocation5 + $0x120] sm:$0xff]
        %v479 = vld [vmem:[#allocation5 + $0x128] sm:$0xff]
        %v480 = vld [vmem:[#allocation5 + $0x130] sm:$0xff]
        %v481 = vld [vmem:[#allocation5 + $0x138] sm:$0xff]
        %v482 = vld [vmem:[#allocation5 + $0x140] sm:$0xff]
        %v483 = vld [vmem:[#allocation5 + $0x148] sm:$0xff]
        %v484 = vld [vmem:[#allocation5 + $0x150] sm:$0xff]
        %v485 = vld [vmem:[#allocation5 + $0x158] sm:$0xff]
        %v486 = vld [vmem:[#allocation5 + $0x160] sm:$0xff]
        %v487 = vld [vmem:[#allocation5 + $0x168] sm:$0xff]
        %v488 = vld [vmem:[#allocation5 + $0x170] sm:$0xff]
        %v489 = vld [vmem:[#allocation5 + $0x178] sm:$0xff]
        %v490 = vld [vmem:[#allocation5 + $0x180] sm:$0xff]
        %v491 = vld [vmem:[#allocation5 + $0x188] sm:$0xff]
        %v492 = vld [vmem:[#allocation5 + $0x190] sm:$0xff]
        %v493 = vld [vmem:[#allocation5 + $0x198] sm:$0xff]
        %v494 = vld [vmem:[#allocation5 + $0x1a0] sm:$0xff]
        %v495 = vld [vmem:[#allocation5 + $0x1a8] sm:$0xff]
        %v496 = vld [vmem:[#allocation5 + $0x1b0] sm:$0xff]
        %v497 = vld [vmem:[#allocation5 + $0x1b8] sm:$0xff]
        %v498 = vld [vmem:[#allocation5 + $0x1c0] sm:$0xff]
        %v499 = vld [vmem:[#allocation5 + $0x1c8] sm:$0xff]
        %v500 = vld [vmem:[#allocation5 + $0x1d0] sm:$0xff]
        %v501 = vld [vmem:[#allocation5 + $0x1d8] sm:$0xff]
        %v502 = vld [vmem:[#allocation5 + $0x1e0] sm:$0xff]
        %v503 = vld [vmem:[#allocation5 + $0x1e8] sm:$0xff]
        %v504 = vld [vmem:[#allocation5 + $0x1f0] sm:$0xff]
        %v505 = vld [vmem:[#allocation5 + $0x1f8] sm:$0xff]
        %v506 = vld [vmem:[#allocation5 + $0x200] sm:$0xff]
        %v507 = vld [vmem:[#allocation5 + $0x208] sm:$0xff]
        %v508 = vld [vmem:[#allocation5 + $0x210] sm:$0xff]
        %v509 = vld [vmem:[#allocation5 + $0x218] sm:$0xff]
        %v510 = vld [vmem:[#allocation5 + $0x220] sm:$0xff]
        %v511 = vld [vmem:[#allocation5 + $0x228] sm:$0xff]
        %v512 = vld [vmem:[#allocation5 + $0x230] sm:$0xff]
        %v513 = vld [vmem:[#allocation5 + $0x238] sm:$0xff]
        %v514 = vld [vmem:[#allocation5 + $0x240] sm:$0xff]
        %v515 = vld [vmem:[#allocation5 + $0x248] sm:$0xff]
        %v516 = vld [vmem:[#allocation5 + $0x250] sm:$0xff]
        %v517 = vld [vmem:[#allocation5 + $0x258] sm:$0xff]
        %v518 = vld [vmem:[#allocation5 + $0x260] sm:$0xff]
        %v519 = vld [vmem:[#allocation5 + $0x268] sm:$0xff]
        %v520 = vld [vmem:[#allocation5 + $0x270] sm:$0xff]
        %v521 = vld [vmem:[#allocation5 + $0x278] sm:$0xff]
        %v522 = vld [vmem:[#allocation5 + $0x280] sm:$0xff]
        %v523 = vld [vmem:[#allocation5 + $0x288] sm:$0xff]
        %v524 = vld [vmem:[#allocation5 + $0x290] sm:$0xff]
        %v525 = vld [vmem:[#allocation5 + $0x298] sm:$0xff]
        %v526 = vld [vmem:[#allocation5 + $0x2a0] sm:$0xff]
        %v527 = vld [vmem:[#allocation5 + $0x2a8] sm:$0xff]
        %v528 = vld [vmem:[#allocation5 + $0x2b0] sm:$0xff]
        %v529 = vld [vmem:[#allocation5 + $0x2b8] sm:$0xff]
        %v530 = vld [vmem:[#allocation5 + $0x2c0] sm:$0xff]
        %v531 = vld [vmem:[#allocation5 + $0x2c8] sm:$0xff]
        %v532 = vld [vmem:[#allocation5 + $0x2d0] sm:$0xff]
        %v533 = vld [vmem:[#allocation5 + $0x2d8] sm:$0xff]
        %v534 = vld [vmem:[#allocation5 + $0x2e0] sm:$0xff]
        %v535 = vld [vmem:[#allocation5 + $0x2e8] sm:$0xff]
        %v536 = vld [vmem:[#allocation5 + $0x2f0] sm:$0xff]
        %v537 = vld [vmem:[#allocation5 + $0x2f8] sm:$0xff]
        %v538 = vld [vmem:[#allocation5 + $0x300] sm:$0xff]
        %v539 = vld [vmem:[#allocation5 + $0x308] sm:$0xff]
        %v540 = vld [vmem:[#allocation5 + $0x310] sm:$0xff]
        %v541 = vld [vmem:[#allocation5 + $0x318] sm:$0xff]
        %v542 = vld [vmem:[#allocation5 + $0x320] sm:$0xff]
        %v543 = vld [vmem:[#allocation5 + $0x328] sm:$0xff]
        %v544 = vld [vmem:[#allocation5 + $0x330] sm:$0xff]
        %v545 = vld [vmem:[#allocation5 + $0x338] sm:$0xff]
        %v546 = vld [vmem:[#allocation5 + $0x340] sm:$0xff]
        %v547 = vld [vmem:[#allocation5 + $0x348] sm:$0xff]
        %v548 = vld [vmem:[#allocation5 + $0x350] sm:$0xff]
        %v549 = vld [vmem:[#allocation5 + $0x358] sm:$0xff]
        %v550 = vld [vmem:[#allocation5 + $0x360] sm:$0xff]
        %v551 = vld [vmem:[#allocation5 + $0x368] sm:$0xff]
        %v552 = vld [vmem:[#allocation5 + $0x370] sm:$0xff]
        %v553 = vld [vmem:[#allocation5 + $0x378] sm:$0xff]
        %v554 = vld [vmem:[#allocation5 + $0x380] sm:$0xff]
        %v555 = vld [vmem:[#allocation5 + $0x388] sm:$0xff]
        %v556 = vld [vmem:[#allocation5 + $0x390] sm:$0xff]
        %v557 = vld [vmem:[#allocation5 + $0x398] sm:$0xff]
        %v558 = vld [vmem:[#allocation5 + $0x3a0] sm:$0xff]
        %v559 = vld [vmem:[#allocation5 + $0x3a8] sm:$0xff]
        %v560 = vld [vmem:[#allocation5 + $0x3b0] sm:$0xff]
        %v561 = vld [vmem:[#allocation5 + $0x3b8] sm:$0xff]
        %v562 = vld [vmem:[#allocation5 + $0x3c0] sm:$0xff]
        %v563 = vld [vmem:[#allocation5 + $0x3c8] sm:$0xff]
        %v564 = vld [vmem:[#allocation5 + $0x3d0] sm:$0xff]
        %v565 = vld [vmem:[#allocation5 + $0x3d8] sm:$0xff]
        %v566 = vld [vmem:[#allocation5 + $0x3e0] sm:$0xff]
        %v567 = vld [vmem:[#allocation5 + $0x3e8] sm:$0xff]
        %v568 = vld [vmem:[#allocation5 + $0x3f0] sm:$0xff]
        %v569 = vld [vmem:[#allocation5 + $0x3f8] sm:$0xff]
        %v570 = vld [vmem:[#allocation5 + $0x400] sm:$0xff]
        %v571 = vld [vmem:[#allocation5 + $0x408] sm:$0xff]
        %v572 = vld [vmem:[#allocation5 + $0x410] sm:$0xff]
        %v573 = vld [vmem:[#allocation5 + $0x418] sm:$0xff]
        %v574 = vld [vmem:[#allocation5 + $0x420] sm:$0xff]
        %v575 = vld [vmem:[#allocation5 + $0x428] sm:$0xff]
        %v576 = vld [vmem:[#allocation5 + $0x430] sm:$0xff]
        %v577 = vld [vmem:[#allocation5 + $0x438] sm:$0xff]
        %v578 = vld [vmem:[#allocation5 + $0x440] sm:$0xff]
        %v579 = vld [vmem:[#allocation5 + $0x448] sm:$0xff]
        %v580 = vld [vmem:[#allocation5 + $0x450] sm:$0xff]
        %v581 = vld [vmem:[#allocation5 + $0x458] sm:$0xff]
        %v582 = vld [vmem:[#allocation5 + $0x460] sm:$0xff]
        %v583 = vld [vmem:[#allocation5 + $0x468] sm:$0xff]
        %v584 = vld [vmem:[#allocation5 + $0x470] sm:$0xff]
        %v585 = vld [vmem:[#allocation5 + $0x478] sm:$0xff]
        %v586 = vld [vmem:[#allocation5 + $0x480] sm:$0xff]
        %v587 = vld [vmem:[#allocation5 + $0x488] sm:$0xff]
        %v588 = vld [vmem:[#allocation5 + $0x490] sm:$0xff]
        %v589 = vld [vmem:[#allocation5 + $0x498] sm:$0xff]
        %v590 = vld [vmem:[#allocation5 + $0x4a0] sm:$0xff]
        %v591 = vld [vmem:[#allocation5 + $0x4a8] sm:$0xff]
        %v592 = vld [vmem:[#allocation5 + $0x4b0] sm:$0xff]
        %v593 = vld [vmem:[#allocation5 + $0x4b8] sm:$0xff]
        %v594 = vld [vmem:[#allocation5 + $0x4c0] sm:$0xff]
        %v595 = vld [vmem:[#allocation5 + $0x4c8] sm:$0xff]
        %v596 = vld [vmem:[#allocation5 + $0x4d0] sm:$0xff]
        %v597 = vld [vmem:[#allocation5 + $0x4d8] sm:$0xff]
        %v598 = vld [vmem:[#allocation5 + $0x4e0] sm:$0xff]
        %v599 = vld [vmem:[#allocation5 + $0x4e8] sm:$0xff]
        %v600 = vld [vmem:[#allocation5 + $0x4f0] sm:$0xff]
        %v601 = vld [vmem:[#allocation5 + $0x4f8] sm:$0xff]
        %v602 = vld [vmem:[#allocation5 + $0x500] sm:$0xff]
        %v603 = vld [vmem:[#allocation5 + $0x508] sm:$0xff]
        %v604 = vld [vmem:[#allocation5 + $0x510] sm:$0xff]
        %v605 = vld [vmem:[#allocation5 + $0x518] sm:$0xff]
        %v606 = vld [vmem:[#allocation5 + $0x520] sm:$0xff]
        %v607 = vld [vmem:[#allocation5 + $0x528] sm:$0xff]
        %v608 = vld [vmem:[#allocation5 + $0x530] sm:$0xff]
        %v609 = vld [vmem:[#allocation5 + $0x538] sm:$0xff]
        %v610 = vld [vmem:[#allocation5 + $0x540] sm:$0xff]
        %v611 = vld [vmem:[#allocation5 + $0x548] sm:$0xff]
        %v612 = vld [vmem:[#allocation5 + $0x550] sm:$0xff]
        %v613 = vld [vmem:[#allocation5 + $0x558] sm:$0xff]
        %v614 = vld [vmem:[#allocation5 + $0x560] sm:$0xff]
        %v615 = vld [vmem:[#allocation5 + $0x568] sm:$0xff]
        %v616 = vld [vmem:[#allocation5 + $0x570] sm:$0xff]
        %v617 = vld [vmem:[#allocation5 + $0x578] sm:$0xff]
        %v618 = vld [vmem:[#allocation5 + $0x580] sm:$0xff]
        %v619 = vld [vmem:[#allocation5 + $0x588] sm:$0xff]
        %v620 = vld [vmem:[#allocation5 + $0x590] sm:$0xff]
        %v621 = vld [vmem:[#allocation5 + $0x598] sm:$0xff]
        %v622 = vld [vmem:[#allocation5 + $0x5a0] sm:$0xff]
        %v623 = vld [vmem:[#allocation5 + $0x5a8] sm:$0xff]
        %v624 = vld [vmem:[#allocation5 + $0x5b0] sm:$0xff]
        %v625 = vld [vmem:[#allocation5 + $0x5b8] sm:$0xff]
        %v626 = vld [vmem:[#allocation5 + $0x5c0] sm:$0xff]
        %v627 = vld [vmem:[#allocation5 + $0x5c8] sm:$0xff]
        %v628 = vld [vmem:[#allocation5 + $0x5d0] sm:$0xff]
        %v629 = vld [vmem:[#allocation5 + $0x5d8] sm:$0xff]
        %v630 = vld [vmem:[#allocation5 + $0x5e0] sm:$0xff]
        %v631 = vld [vmem:[#allocation5 + $0x5e8] sm:$0xff]
        %v632 = vld [vmem:[#allocation5 + $0x5f0] sm:$0xff]
        %v633 = vld [vmem:[#allocation5 + $0x5f8] sm:$0xff]
        %v634 = vld [vmem:[#allocation5 + $0x600] sm:$0xff]
        %v635 = vld [vmem:[#allocation5 + $0x608] sm:$0xff]
        %v636 = vld [vmem:[#allocation5 + $0x610] sm:$0xff]
        %v637 = vld [vmem:[#allocation5 + $0x618] sm:$0xff]
        %v638 = vld [vmem:[#allocation5 + $0x620] sm:$0xff]
        %v639 = vld [vmem:[#allocation5 + $0x628] sm:$0xff]
        %v640 = vld [vmem:[#allocation5 + $0x630] sm:$0xff]
        %v641 = vld [vmem:[#allocation5 + $0x638] sm:$0xff]
        %v642 = vld [vmem:[#allocation5 + $0x640] sm:$0xff]
        %v643 = vld [vmem:[#allocation5 + $0x648] sm:$0xff]
        %v644 = vld [vmem:[#allocation5 + $0x650] sm:$0xff]
        %v645 = vld [vmem:[#allocation5 + $0x658] sm:$0xff]
        %v646 = vld [vmem:[#allocation5 + $0x660] sm:$0xff]
        %v647 = vld [vmem:[#allocation5 + $0x668] sm:$0xff]
        %v648 = vld [vmem:[#allocation5 + $0x670] sm:$0xff]
        %v649 = vld [vmem:[#allocation5 + $0x678] sm:$0xff]
        %v650 = vld [vmem:[#allocation5 + $0x680] sm:$0xff]
        %v651 = vld [vmem:[#allocation5 + $0x688] sm:$0xff]
        %v652 = vld [vmem:[#allocation5 + $0x690] sm:$0xff]
        %v653 = vld [vmem:[#allocation5 + $0x698] sm:$0xff]
        %v654 = vld [vmem:[#allocation5 + $0x6a0] sm:$0xff]
        %v655 = vld [vmem:[#allocation5 + $0x6a8] sm:$0xff]
        %v656 = vld [vmem:[#allocation5 + $0x6b0] sm:$0xff]
        %v657 = vld [vmem:[#allocation5 + $0x6b8] sm:$0xff]
        %v658 = vld [vmem:[#allocation5 + $0x6c0] sm:$0xff]
        %v659 = vld [vmem:[#allocation5 + $0x6c8] sm:$0xff]
        %v660 = vld [vmem:[#allocation5 + $0x6d0] sm:$0xff]
        %v661 = vld [vmem:[#allocation5 + $0x6d8] sm:$0xff]
        %v662 = vld [vmem:[#allocation5 + $0x6e0] sm:$0xff]
        %v663 = vld [vmem:[#allocation5 + $0x6e8] sm:$0xff]
        %v664 = vld [vmem:[#allocation5 + $0x6f0] sm:$0xff]
        %v665 = vld [vmem:[#allocation5 + $0x6f8] sm:$0xff]
        %v666 = vld [vmem:[#allocation5 + $0x700] sm:$0xff]
        %v667 = vld [vmem:[#allocation5 + $0x708] sm:$0xff]
        %v668 = vld [vmem:[#allocation5 + $0x710] sm:$0xff]
        %v669 = vld [vmem:[#allocation5 + $0x718] sm:$0xff]
        %v670 = vld [vmem:[#allocation5 + $0x720] sm:$0xff]
        %v671 = vld [vmem:[#allocation5 + $0x728] sm:$0xff]
        %v672 = vld [vmem:[#allocation5 + $0x730] sm:$0xff]
        %v673 = vld [vmem:[#allocation5 + $0x738] sm:$0xff]
        %v674 = vld [vmem:[#allocation5 + $0x740] sm:$0xff]
        %v675 = vld [vmem:[#allocation5 + $0x748] sm:$0xff]
        %v676 = vld [vmem:[#allocation5 + $0x750] sm:$0xff]
        %v677 = vld [vmem:[#allocation5 + $0x758] sm:$0xff]
        %v678 = vld [vmem:[#allocation5 + $0x760] sm:$0xff]
        %v679 = vld [vmem:[#allocation5 + $0x768] sm:$0xff]
        %v680 = vld [vmem:[#allocation5 + $0x770] sm:$0xff]
        %v681 = vld [vmem:[#allocation5 + $0x778] sm:$0xff]
        %v682 = vld [vmem:[#allocation5 + $0x780] sm:$0xff]
        %v683 = vld [vmem:[#allocation5 + $0x788] sm:$0xff]
        %v684 = vld [vmem:[#allocation5 + $0x790] sm:$0xff]
        %v685 = vld [vmem:[#allocation5 + $0x798] sm:$0xff]
        %v686 = vld [vmem:[#allocation5 + $0x7a0] sm:$0xff]
        %v687 = vld [vmem:[#allocation5 + $0x7a8] sm:$0xff]
        %v688 = vld [vmem:[#allocation5 + $0x7b0] sm:$0xff]
        %v689 = vld [vmem:[#allocation5 + $0x7b8] sm:$0xff]
        %v690 = vld [vmem:[#allocation5 + $0x7c0] sm:$0xff]
        %v691 = vld [vmem:[#allocation5 + $0x7c8] sm:$0xff]
        %v692 = vld [vmem:[#allocation5 + $0x7d0] sm:$0xff]
        %v693 = vld [vmem:[#allocation5 + $0x7d8] sm:$0xff]
        %v694 = vld [vmem:[#allocation5 + $0x7e0] sm:$0xff]
        %v695 = vld [vmem:[#allocation5 + $0x7e8] sm:$0xff]
        %v696 = vld [vmem:[#allocation5 + $0x7f0] sm:$0xff]
        %v697 = vld [vmem:[#allocation5 + $0x7f8] sm:$0xff]
        %v698 = vld [vmem:[#allocation5 + $0x800] sm:$0xff]
        %v699 = vld [vmem:[#allocation5 + $0x808] sm:$0xff]
        %v700 = vld [vmem:[#allocation5 + $0x810] sm:$0xff]
        %v701 = vld [vmem:[#allocation5 + $0x818] sm:$0xff]
        %v702 = vld [vmem:[#allocation5 + $0x820] sm:$0xff]
        %v703 = vld [vmem:[#allocation5 + $0x828] sm:$0xff]
        %v704 = vld [vmem:[#allocation5 + $0x830] sm:$0xff]
        %v705 = vld [vmem:[#allocation5 + $0x838] sm:$0xff]
        %v706 = vld [vmem:[#allocation5 + $0x840] sm:$0xff]
        %v707 = vld [vmem:[#allocation5 + $0x848] sm:$0xff]
        %v708 = vld [vmem:[#allocation5 + $0x850] sm:$0xff]
        %v709 = vld [vmem:[#allocation5 + $0x858] sm:$0xff]
        %v710 = vld [vmem:[#allocation5 + $0x860] sm:$0xff]
        %v711 = vld [vmem:[#allocation5 + $0x868] sm:$0xff]
        %v712 = vld [vmem:[#allocation5 + $0x870] sm:$0xff]
        %v713 = vld [vmem:[#allocation5 + $0x878] sm:$0xff]
        %v714 = vld [vmem:[#allocation5 + $0x880] sm:$0xff]
        %v715 = vld [vmem:[#allocation5 + $0x888] sm:$0xff]
        %v716 = vld [vmem:[#allocation5 + $0x890] sm:$0xff]
        %v717 = vld [vmem:[#allocation5 + $0x898] sm:$0xff]
        %v718 = vld [vmem:[#allocation5 + $0x8a0] sm:$0xff]
        %v719 = vld [vmem:[#allocation5 + $0x8a8] sm:$0xff]
        %v720 = vld [vmem:[#allocation5 + $0x8b0] sm:$0xff]
        %v721 = vld [vmem:[#allocation5 + $0x8b8] sm:$0xff]
        %v722 = vld [vmem:[#allocation5 + $0x8c0] sm:$0xff]
        %v723 = vld [vmem:[#allocation5 + $0x8c8] sm:$0xff]
        %v724 = vld [vmem:[#allocation5 + $0x8d0] sm:$0xff]
        %v725 = vld [vmem:[#allocation5 + $0x8d8] sm:$0xff]
        %v726 = vld [vmem:[#allocation5 + $0x8e0] sm:$0xff]
        %v727 = vld [vmem:[#allocation5 + $0x8e8] sm:$0xff]
        %v728 = vld [vmem:[#allocation5 + $0x8f0] sm:$0xff]
        %v729 = vld [vmem:[#allocation5 + $0x8f8] sm:$0xff]
        %v730 = vld [vmem:[#allocation5 + $0x900] sm:$0xff]
        %v731 = vld [vmem:[#allocation5 + $0x908] sm:$0xff]
        %v732 = vld [vmem:[#allocation5 + $0x910] sm:$0xff]
        %v733 = vld [vmem:[#allocation5 + $0x918] sm:$0xff]
        %v734 = vld [vmem:[#allocation5 + $0x920] sm:$0xff]
        %v735 = vld [vmem:[#allocation5 + $0x928] sm:$0xff]
        %v736 = vld [vmem:[#allocation5 + $0x930] sm:$0xff]
        %v737 = vld [vmem:[#allocation5 + $0x938] sm:$0xff]
        %v738 = vld [vmem:[#allocation5 + $0x940] sm:$0xff]
        %v739 = vld [vmem:[#allocation5 + $0x948] sm:$0xff]
        %v740 = vld [vmem:[#allocation5 + $0x950] sm:$0xff]
        %v741 = vld [vmem:[#allocation5 + $0x958] sm:$0xff]
        %v742 = vld [vmem:[#allocation5 + $0x960] sm:$0xff]
        %v743 = vld [vmem:[#allocation5 + $0x968] sm:$0xff]
        %v744 = vld [vmem:[#allocation5 + $0x970] sm:$0xff]
        %v745 = vld [vmem:[#allocation5 + $0x978] sm:$0xff]
        %v746 = vld [vmem:[#allocation5 + $0x980] sm:$0xff]
        %v747 = vld [vmem:[#allocation5 + $0x988] sm:$0xff]
        %v748 = vld [vmem:[#allocation5 + $0x990] sm:$0xff]
        %v749 = vld [vmem:[#allocation5 + $0x998] sm:$0xff]
        %v750 = vld [vmem:[#allocation5 + $0x9a0] sm:$0xff]
        %v751 = vld [vmem:[#allocation5 + $0x9a8] sm:$0xff]
        %v752 = vld [vmem:[#allocation5 + $0x9b0] sm:$0xff]
        %v753 = vld [vmem:[#allocation5 + $0x9b8] sm:$0xff]
        %v754 = vld [vmem:[#allocation5 + $0x9c0] sm:$0xff]
        %v755 = vld [vmem:[#allocation5 + $0x9c8] sm:$0xff]
        %v756 = vld [vmem:[#allocation5 + $0x9d0] sm:$0xff]
        %v757 = vld [vmem:[#allocation5 + $0x9d8] sm:$0xff]
        %v758 = vld [vmem:[#allocation5 + $0x9e0] sm:$0xff]
        %v759 = vld [vmem:[#allocation5 + $0x9e8] sm:$0xff]
        %v760 = vld [vmem:[#allocation5 + $0x9f0] sm:$0xff]
        %v761 = vld [vmem:[#allocation5 + $0x9f8] sm:$0xff]
        %v762 = vld [vmem:[#allocation5 + $0xa00] sm:$0xff]
        %v763 = vld [vmem:[#allocation5 + $0xa08] sm:$0xff]
        %v764 = vld [vmem:[#allocation5 + $0xa10] sm:$0xff]
        %v765 = vld [vmem:[#allocation5 + $0xa18] sm:$0xff]
        %v766 = vld [vmem:[#allocation5 + $0xa20] sm:$0xff]
        %v767 = vld [vmem:[#allocation5 + $0xa28] sm:$0xff]
        %v768 = vld [vmem:[#allocation5 + $0xa30] sm:$0xff]
        %v769 = vld [vmem:[#allocation5 + $0xa38] sm:$0xff]
        %v770 = vld [vmem:[#allocation5 + $0xa40] sm:$0xff]
        %v771 = vld [vmem:[#allocation5 + $0xa48] sm:$0xff]
        %v772 = vld [vmem:[#allocation5 + $0xa50] sm:$0xff]
        %v773 = vld [vmem:[#allocation5 + $0xa58] sm:$0xff]
        %v774 = vld [vmem:[#allocation5 + $0xa60] sm:$0xff]
        %v775 = vld [vmem:[#allocation5 + $0xa68] sm:$0xff]
        %v776 = vld [vmem:[#allocation5 + $0xa70] sm:$0xff]
        %v777 = vld [vmem:[#allocation5 + $0xa78] sm:$0xff]
        %v778 = vld [vmem:[#allocation5 + $0xa80] sm:$0xff]
        %v779 = vld [vmem:[#allocation5 + $0xa88] sm:$0xff]
        %v780 = vld [vmem:[#allocation5 + $0xa90] sm:$0xff]
        %v781 = vld [vmem:[#allocation5 + $0xa98] sm:$0xff]
        %v782 = vld [vmem:[#allocation5 + $0xaa0] sm:$0xff]
        %v783 = vld [vmem:[#allocation5 + $0xaa8] sm:$0xff]
        %v784 = vld [vmem:[#allocation5 + $0xab0] sm:$0xff]
        %v785 = vld [vmem:[#allocation5 + $0xab8] sm:$0xff]
        %v786 = vld [vmem:[#allocation5 + $0xac0] sm:$0xff]
        %v787 = vld [vmem:[#allocation5 + $0xac8] sm:$0xff]
        %v788 = vld [vmem:[#allocation5 + $0xad0] sm:$0xff]
        %v789 = vld [vmem:[#allocation5 + $0xad8] sm:$0xff]
        %v790 = vld [vmem:[#allocation5 + $0xae0] sm:$0xff]
        %v791 = vld [vmem:[#allocation5 + $0xae8] sm:$0xff]
        %v792 = vld [vmem:[#allocation5 + $0xaf0] sm:$0xff]
        %v793 = vld [vmem:[#allocation5 + $0xaf8] sm:$0xff]
        %v794 = vld [vmem:[#allocation5 + $0xb00] sm:$0xff]
        %v795 = vld [vmem:[#allocation5 + $0xb08] sm:$0xff]
        %v796 = vld [vmem:[#allocation5 + $0xb10] sm:$0xff]
        %v797 = vld [vmem:[#allocation5 + $0xb18] sm:$0xff]
        %v798 = vld [vmem:[#allocation5 + $0xb20] sm:$0xff]
        %v799 = vld [vmem:[#allocation5 + $0xb28] sm:$0xff]
        %v800 = vld [vmem:[#allocation5 + $0xb30] sm:$0xff]
        %v801 = vld [vmem:[#allocation5 + $0xb38] sm:$0xff]
        %v802 = vld [vmem:[#allocation5 + $0xb40] sm:$0xff]
        %v803 = vld [vmem:[#allocation5 + $0xb48] sm:$0xff]
        %v804 = vld [vmem:[#allocation5 + $0xb50] sm:$0xff]
        %v805 = vld [vmem:[#allocation5 + $0xb58] sm:$0xff]
        %v806 = vld [vmem:[#allocation5 + $0xb60] sm:$0xff]
        %v807 = vld [vmem:[#allocation5 + $0xb68] sm:$0xff]
        %v808 = vld [vmem:[#allocation5 + $0xb70] sm:$0xff]
        %v809 = vld [vmem:[#allocation5 + $0xb78] sm:$0xff]
        %v810 = vld [vmem:[#allocation5 + $0xb80] sm:$0xff]
        %v811 = vld [vmem:[#allocation5 + $0xb88] sm:$0xff]
        %v812 = vld [vmem:[#allocation5 + $0xb90] sm:$0xff]
        %v813 = vld [vmem:[#allocation5 + $0xb98] sm:$0xff]
        %v814 = vld [vmem:[#allocation5 + $0xba0] sm:$0xff]
        %v815 = vld [vmem:[#allocation5 + $0xba8] sm:$0xff]
        %v816 = vld [vmem:[#allocation5 + $0xbb0] sm:$0xff]
        %v817 = vld [vmem:[#allocation5 + $0xbb8] sm:$0xff]
        %v818 = vld [vmem:[#allocation5 + $0xbc0] sm:$0xff]
        %v819 = vld [vmem:[#allocation5 + $0xbc8] sm:$0xff]
        %v820 = vld [vmem:[#allocation5 + $0xbd0] sm:$0xff]
        %v821 = vld [vmem:[#allocation5 + $0xbd8] sm:$0xff]
        %v822 = vld [vmem:[#allocation5 + $0xbe0] sm:$0xff]
        %v823 = vld [vmem:[#allocation5 + $0xbe8] sm:$0xff]
        %v824 = vld [vmem:[#allocation5 + $0xbf0] sm:$0xff]
        %v825 = vld [vmem:[#allocation5 + $0xbf8] sm:$0xff]
        %v826 = vld [vmem:[#allocation5 + $0xc00] sm:$0xff]
        %v827 = vld [vmem:[#allocation5 + $0xc08] sm:$0xff]
        %v828 = vld [vmem:[#allocation5 + $0xc10] sm:$0xff]
        %v829 = vld [vmem:[#allocation5 + $0xc18] sm:$0xff]
        %v830 = vld [vmem:[#allocation5 + $0xc20] sm:$0xff]
        %v831 = vld [vmem:[#allocation5 + $0xc28] sm:$0xff]
        %v832 = vld [vmem:[#allocation5 + $0xc30] sm:$0xff]
        %v833 = vld [vmem:[#allocation5 + $0xc38] sm:$0xff]
        %v834 = vld [vmem:[#allocation5 + $0xc40] sm:$0xff]
        %v835 = vld [vmem:[#allocation5 + $0xc48] sm:$0xff]
        %v836 = vld [vmem:[#allocation5 + $0xc50] sm:$0xff]
        %v837 = vld [vmem:[#allocation5 + $0xc58] sm:$0xff]
        %v838 = vld [vmem:[#allocation5 + $0xc60] sm:$0xff]
        %v839 = vld [vmem:[#allocation5 + $0xc68] sm:$0xff]
        %v840 = vld [vmem:[#allocation5 + $0xc70] sm:$0xff]
        %v841 = vld [vmem:[#allocation5 + $0xc78] sm:$0xff]
        %v842 = vld [vmem:[#allocation5 + $0xc80] sm:$0xff]
        %v843 = vld [vmem:[#allocation5 + $0xc88] sm:$0xff]
        %v844 = vld [vmem:[#allocation5 + $0xc90] sm:$0xff]
        %v845 = vld [vmem:[#allocation5 + $0xc98] sm:$0xff]
        %v846 = vld [vmem:[#allocation5 + $0xca0] sm:$0xff]
        %v847 = vld [vmem:[#allocation5 + $0xca8] sm:$0xff]
        %v848 = vld [vmem:[#allocation5 + $0xcb0] sm:$0xff]
        %v849 = vld [vmem:[#allocation5 + $0xcb8] sm:$0xff]
        %v850 = vld [vmem:[#allocation5 + $0xcc0] sm:$0xff]
        %v851 = vld [vmem:[#allocation5 + $0xcc8] sm:$0xff]
        %v852 = vld [vmem:[#allocation5 + $0xcd0] sm:$0xff]
        %v853 = vld [vmem:[#allocation5 + $0xcd8] sm:$0xff]
        %v854 = vld [vmem:[#allocation5 + $0xce0] sm:$0xff]
        %v855 = vld [vmem:[#allocation5 + $0xce8] sm:$0xff]
        %v856 = vld [vmem:[#allocation5 + $0xcf0] sm:$0xff]
        %v857 = vld [vmem:[#allocation5 + $0xcf8] sm:$0xff]
        %v858 = vld [vmem:[#allocation5 + $0xd00] sm:$0xff]
        %v859 = vld [vmem:[#allocation5 + $0xd08] sm:$0xff]
        %v860 = vld [vmem:[#allocation5 + $0xd10] sm:$0xff]
        %v861 = vld [vmem:[#allocation5 + $0xd18] sm:$0xff]
        %v862 = vld [vmem:[#allocation5 + $0xd20] sm:$0xff]
        %v863 = vld [vmem:[#allocation5 + $0xd28] sm:$0xff]
        %v864 = vld [vmem:[#allocation5 + $0xd30] sm:$0xff]
        %v865 = vld [vmem:[#allocation5 + $0xd38] sm:$0xff]
        %v866 = vld [vmem:[#allocation5 + $0xd40] sm:$0xff]
        %v867 = vld [vmem:[#allocation5 + $0xd48] sm:$0xff]
        %v868 = vld [vmem:[#allocation5 + $0xd50] sm:$0xff]
        %v869 = vld [vmem:[#allocation5 + $0xd58] sm:$0xff]
        %v870 = vld [vmem:[#allocation5 + $0xd60] sm:$0xff]
        %v871 = vld [vmem:[#allocation5 + $0xd68] sm:$0xff]
        %v872 = vld [vmem:[#allocation5 + $0xd70] sm:$0xff]
        %v873 = vld [vmem:[#allocation5 + $0xd78] sm:$0xff]
        %v874 = vld [vmem:[#allocation5 + $0xd80] sm:$0xff]
        %v875 = vld [vmem:[#allocation5 + $0xd88] sm:$0xff]
        %v876 = vld [vmem:[#allocation5 + $0xd90] sm:$0xff]
        %v877 = vld [vmem:[#allocation5 + $0xd98] sm:$0xff]
        %v878 = vld [vmem:[#allocation5 + $0xda0] sm:$0xff]
        %v879 = vld [vmem:[#allocation5 + $0xda8] sm:$0xff]
        %v880 = vld [vmem:[#allocation5 + $0xdb0] sm:$0xff]
        %v881 = vld [vmem:[#allocation5 + $0xdb8] sm:$0xff]
        %v882 = vld [vmem:[#allocation5 + $0xdc0] sm:$0xff]
        %v883 = vld [vmem:[#allocation5 + $0xdc8] sm:$0xff]
        %v884 = vld [vmem:[#allocation5 + $0xdd0] sm:$0xff]
        %v885 = vld [vmem:[#allocation5 + $0xdd8] sm:$0xff]
        %v886 = vld [vmem:[#allocation5 + $0xde0] sm:$0xff]
        %v887 = vld [vmem:[#allocation5 + $0xde8] sm:$0xff]
        %v888 = vld [vmem:[#allocation5 + $0xdf0] sm:$0xff]
        %v889 = vld [vmem:[#allocation5 + $0xdf8] sm:$0xff]
        %v890 = vld [vmem:[#allocation5 + $0xe00] sm:$0xff]
        %v891 = vld [vmem:[#allocation5 + $0xe08] sm:$0xff]
        %v892 = vld [vmem:[#allocation5 + $0xe10] sm:$0xff]
        %v893 = vld [vmem:[#allocation5 + $0xe18] sm:$0xff]
        %v894 = vld [vmem:[#allocation5 + $0xe20] sm:$0xff]
        %v895 = vld [vmem:[#allocation5 + $0xe28] sm:$0xff]
        %v896 = vld [vmem:[#allocation5 + $0xe30] sm:$0xff]
        %v897 = vld [vmem:[#allocation5 + $0xe38] sm:$0xff]
        %v898 = vld [vmem:[#allocation5 + $0xe40] sm:$0xff]
        %v899 = vld [vmem:[#allocation5 + $0xe48] sm:$0xff]
        %v900 = vld [vmem:[#allocation5 + $0xe50] sm:$0xff]
        %v901 = vld [vmem:[#allocation5 + $0xe58] sm:$0xff]
        %v902 = vld [vmem:[#allocation5 + $0xe60] sm:$0xff]
        %v903 = vld [vmem:[#allocation5 + $0xe68] sm:$0xff]
        %v904 = vld [vmem:[#allocation5 + $0xe70] sm:$0xff]
        %v905 = vld [vmem:[#allocation5 + $0xe78] sm:$0xff]
        %v906 = vld [vmem:[#allocation5 + $0xe80] sm:$0xff]
        %v907 = vld [vmem:[#allocation5 + $0xe88] sm:$0xff]
        %v908 = vld [vmem:[#allocation5 + $0xe90] sm:$0xff]
        %v909 = vld [vmem:[#allocation5 + $0xe98] sm:$0xff]
        %v910 = vld [vmem:[#allocation5 + $0xea0] sm:$0xff]
        %v911 = vld [vmem:[#allocation5 + $0xea8] sm:$0xff]
        %v912 = vld [vmem:[#allocation5 + $0xeb0] sm:$0xff]
        %v913 = vld [vmem:[#allocation5 + $0xeb8] sm:$0xff]
        %v914 = vld [vmem:[#allocation5 + $0xec0] sm:$0xff]
        %v915 = vld [vmem:[#allocation5 + $0xec8] sm:$0xff]
        %v916 = vld [vmem:[#allocation5 + $0xed0] sm:$0xff]
        %v917 = vld [vmem:[#allocation5 + $0xed8] sm:$0xff]
        %v918 = vld [vmem:[#allocation5 + $0xee0] sm:$0xff]
        %v919 = vld [vmem:[#allocation5 + $0xee8] sm:$0xff]
        %v920 = vld [vmem:[#allocation5 + $0xef0] sm:$0xff]
        %v921 = vld [vmem:[#allocation5 + $0xef8] sm:$0xff]
        %v922 = vld [vmem:[#allocation5 + $0xf00] sm:$0xff]
        %v923 = vld [vmem:[#allocation5 + $0xf08] sm:$0xff]
        %v924 = vld [vmem:[#allocation5 + $0xf10] sm:$0xff]
        %v925 = vld [vmem:[#allocation5 + $0xf18] sm:$0xff]
        %v926 = vld [vmem:[#allocation5 + $0xf20] sm:$0xff]
        %v927 = vld [vmem:[#allocation5 + $0xf28] sm:$0xff]
        %v928 = vld [vmem:[#allocation5 + $0xf30] sm:$0xff]
        %v929 = vld [vmem:[#allocation5 + $0xf38] sm:$0xff]
        %v930 = vld [vmem:[#allocation5 + $0xf40] sm:$0xff]
        %v931 = vld [vmem:[#allocation5 + $0xf48] sm:$0xff]
        %v932 = vld [vmem:[#allocation5 + $0xf50] sm:$0xff]
        %v933 = vld [vmem:[#allocation5 + $0xf58] sm:$0xff]
        %v934 = vld [vmem:[#allocation5 + $0xf60] sm:$0xff]
        %v935 = vld [vmem:[#allocation5 + $0xf68] sm:$0xff]
        %v936 = vld [vmem:[#allocation5 + $0xf70] sm:$0xff]
        %v937 = vld [vmem:[#allocation5 + $0xf78] sm:$0xff]
        %v938 = vld [vmem:[#allocation5 + $0xf80] sm:$0xff]
        %v939 = vld [vmem:[#allocation5 + $0xf88] sm:$0xff]
        %v940 = vld [vmem:[#allocation5 + $0xf90] sm:$0xff]
        %v941 = vld [vmem:[#allocation5 + $0xf98] sm:$0xff]
        %v942 = vld [vmem:[#allocation5 + $0xfa0] sm:$0xff]
        %v943 = vld [vmem:[#allocation5 + $0xfa8] sm:$0xff]
        %v944 = vld [vmem:[#allocation5 + $0xfb0] sm:$0xff]
        %v945 = vld [vmem:[#allocation5 + $0xfb8] sm:$0xff]
        %v946 = vld [vmem:[#allocation5 + $0xfc0] sm:$0xff]
        %v947 = vld [vmem:[#allocation5 + $0xfc8] sm:$0xff]
        %v948 = vld [vmem:[#allocation5 + $0xfd0] sm:$0xff]
        %v949 = vld [vmem:[#allocation5 + $0xfd8] sm:$0xff]
        %v950 = vld [vmem:[#allocation5 + $0xfe0] sm:$0xff]
        %v951 = vld [vmem:[#allocation5 + $0xfe8] sm:$0xff]
        %v952 = vld [vmem:[#allocation5 + $0xff0] sm:$0xff]
        %v953 = vld [vmem:[#allocation5 + $0xff8] sm:$0xff]
        %954 = vmatprep.subr.mxu0 0.0
        %955 = vmatpush1.msra.mxu0 %v442
        %956 = vmatprep.subr.mxu0 0.0
        %957 = vmatpush1.msra.mxu0 %v443
        %958 = vmatprep.subr.mxu0 0.0
        %959 = vmatpush1.msra.mxu0 %v444
        %960 = vmatprep.subr.mxu0 0.0
        %961 = vmatpush1.msra.mxu0 %v445
        %962 = vmatprep.subr.mxu0 0.0
        %963 = vmatpush1.msra.mxu0 %v446
        %964 = vmatprep.subr.mxu0 0.0
        %965 = vmatpush1.msra.mxu0 %v447
        %966 = vmatprep.subr.mxu0 0.0
        %967 = vmatpush1.msra.mxu0 %v448
        %968 = vmatprep.subr.mxu0 0.0
        %969 = vmatpush1.msra.mxu0 %v449
        %970 = vmatprep.subr.mxu0 0.0
        %971 = vmatpush1.msra.mxu0 %v450
        %972 = vmatprep.subr.mxu0 0.0
        %973 = vmatpush1.msra.mxu0 %v451
        %974 = vmatprep.subr.mxu0 0.0
        %975 = vmatpush1.msra.mxu0 %v452
        %976 = vmatprep.subr.mxu0 0.0
        %977 = vmatpush1.msra.mxu0 %v453
        %978 = vmatprep.subr.mxu0 0.0
        %979 = vmatpush1.msra.mxu0 %v454
        %980 = vmatprep.subr.mxu0 0.0
        %981 = vmatpush1.msra.mxu0 %v455
        %982 = vmatprep.subr.mxu0 0.0
        %983 = vmatpush1.msra.mxu0 %v456
        %984 = vmatprep.subr.mxu0 0.0
        %985 = vmatpush1.msra.mxu0 %v457
        %986 = vmatprep.subr.mxu0 0.0
        %987 = vmatpush1.msra.mxu0 %v458
        %988 = vmatprep.subr.mxu0 0.0
        %989 = vmatpush1.msra.mxu0 %v459
        %990 = vmatprep.subr.mxu0 0.0
        %991 = vmatpush1.msra.mxu0 %v460
        %992 = vmatprep.subr.mxu0 0.0
        %993 = vmatpush1.msra.mxu0 %v461
        %994 = vmatprep.subr.mxu0 0.0
        %995 = vmatpush1.msra.mxu0 %v462
        %996 = vmatprep.subr.mxu0 0.0
        %997 = vmatpush1.msra.mxu0 %v463
        %998 = vmatprep.subr.mxu0 0.0
        %999 = vmatpush1.msra.mxu0 %v464
        %1000 = vmatprep.subr.mxu0 0.0
        %1001 = vmatpush1.msra.mxu0 %v465
        %1002 = vmatprep.subr.mxu0 0.0
        %1003 = vmatpush1.msra.mxu0 %v466
        %1004 = vmatprep.subr.mxu0 0.0
        %1005 = vmatpush1.msra.mxu0 %v467
        %1006 = vmatprep.subr.mxu0 0.0
        %1007 = vmatpush1.msra.mxu0 %v468
        %1008 = vmatprep.subr.mxu0 0.0
        %1009 = vmatpush1.msra.mxu0 %v469
        %1010 = vmatprep.subr.mxu0 0.0
        %1011 = vmatpush1.msra.mxu0 %v470
        %1012 = vmatprep.subr.mxu0 0.0
        %1013 = vmatpush1.msra.mxu0 %v471
        %1014 = vmatprep.subr.mxu0 0.0
        %1015 = vmatpush1.msra.mxu0 %v472
        %1016 = vmatprep.subr.mxu0 0.0
        %1017 = vmatpush1.msra.mxu0 %v473
        %1018 = vmatprep.mubr.f32.mxu0 %v411
        %1019 = vmatmul.mubr.f32.gmra.mrb[0].mxu0 %v410
        %v1020 = vpop.f32.mrb[0].mxu0
        %v1021 = vadd.f32 %v367, %v1020
        %v1022 = vpop.f32.mrb[0].mxu0
        %1023 = vdwg.mxu0
        %1024 = vmatprep.subr.mxu0 0.0
        %1025 = vmatpush1.msra.mxu0 %v474
        %1026 = vmatprep.subr.mxu0 0.0
        %1027 = vmatpush1.msra.mxu0 %v475
        %1028 = vmatprep.subr.mxu0 0.0
        %1029 = vmatpush1.msra.mxu0 %v476
        %1030 = vmatprep.subr.mxu0 0.0
        %1031 = vmatpush1.msra.mxu0 %v477
        %1032 = vmatprep.subr.mxu0 0.0
        %1033 = vmatpush1.msra.mxu0 %v478
        %1034 = vmatprep.subr.mxu0 0.0
        %1035 = vmatpush1.msra.mxu0 %v479
        %1036 = vmatprep.subr.mxu0 0.0
        %1037 = vmatpush1.msra.mxu0 %v480
        %1038 = vmatprep.subr.mxu0 0.0
        %1039 = vmatpush1.msra.mxu0 %v481
        %1040 = vmatprep.subr.mxu0 0.0
        %1041 = vmatpush1.msra.mxu0 %v482
        %1042 = vmatprep.subr.mxu0 0.0
        %1043 = vmatpush1.msra.mxu0 %v483
        %1044 = vmatprep.subr.mxu0 0.0
        %1045 = vmatpush1.msra.mxu0 %v484
        %1046 = vmatprep.subr.mxu0 0.0
        %1047 = vmatpush1.msra.mxu0 %v485
        %1048 = vmatprep.subr.mxu0 0.0
        %1049 = vmatpush1.msra.mxu0 %v486
        %1050 = vmatprep.subr.mxu0 0.0
        %1051 = vmatpush1.msra.mxu0 %v487
        %1052 = vmatprep.subr.mxu0 0.0
        %1053 = vmatpush1.msra.mxu0 %v488
        %1054 = vmatprep.subr.mxu0 0.0
        %1055 = vmatpush1.msra.mxu0 %v489
        %1056 = vmatprep.subr.mxu0 0.0
        %1057 = vmatpush1.msra.mxu0 %v490
        %1058 = vmatprep.subr.mxu0 0.0
        %1059 = vmatpush1.msra.mxu0 %v491
        %1060 = vmatprep.subr.mxu0 0.0
        %1061 = vmatpush1.msra.mxu0 %v492
        %1062 = vmatprep.subr.mxu0 0.0
        %1063 = vmatpush1.msra.mxu0 %v493
        %1064 = vmatprep.subr.mxu0 0.0
        %1065 = vmatpush1.msra.mxu0 %v494
        %1066 = vmatprep.subr.mxu0 0.0
        %1067 = vmatpush1.msra.mxu0 %v495
        %1068 = vmatprep.subr.mxu0 0.0
        %1069 = vmatpush1.msra.mxu0 %v496
        %1070 = vmatprep.subr.mxu0 0.0
        %1071 = vmatpush1.msra.mxu0 %v497
        %1072 = vmatprep.subr.mxu0 0.0
        %1073 = vmatpush1.msra.mxu0 %v498
        %1074 = vmatprep.subr.mxu0 0.0
        %1075 = vmatpush1.msra.mxu0 %v499
        %1076 = vmatprep.subr.mxu0 0.0
        %1077 = vmatpush1.msra.mxu0 %v500
        %1078 = vmatprep.subr.mxu0 0.0
        %1079 = vmatpush1.msra.mxu0 %v501
        %1080 = vmatprep.subr.mxu0 0.0
        %1081 = vmatpush1.msra.mxu0 %v502
        %1082 = vmatprep.subr.mxu0 0.0
        %1083 = vmatpush1.msra.mxu0 %v503
        %1084 = vmatprep.subr.mxu0 0.0
        %1085 = vmatpush1.msra.mxu0 %v504
        %1086 = vmatprep.subr.mxu0 0.0
        %1087 = vmatpush1.msra.mxu0 %v505
        %1088 = vmatprep.mubr.f32.mxu0 %v413
        %1089 = vmatmul.mubr.f32.gmra.mrb[0].mxu0 %v412
        %v1090 = vpop.f32.mrb[0].mxu0
        %v1091 = vadd.f32 %v1021, %v1090
        %v1092 = vpop.f32.mrb[0].mxu0
        %1093 = vdwg.mxu0
        %1094 = vmatprep.subr.mxu0 0.0
        %1095 = vmatpush1.msra.mxu0 %v506
        %1096 = vmatprep.subr.mxu0 0.0
        %1097 = vmatpush1.msra.mxu0 %v507
        %1098 = vmatprep.subr.mxu0 0.0
        %1099 = vmatpush1.msra.mxu0 %v508
        %1100 = vmatprep.subr.mxu0 0.0
        %1101 = vmatpush1.msra.mxu0 %v509
        %1102 = vmatprep.subr.mxu0 0.0
        %1103 = vmatpush1.msra.mxu0 %v510
        %1104 = vmatprep.subr.mxu0 0.0
        %1105 = vmatpush1.msra.mxu0 %v511
        %1106 = vmatprep.subr.mxu0 0.0
        %1107 = vmatpush1.msra.mxu0 %v512
        %1108 = vmatprep.subr.mxu0 0.0
        %1109 = vmatpush1.msra.mxu0 %v513
        %1110 = vmatprep.subr.mxu0 0.0
        %1111 = vmatpush1.msra.mxu0 %v514
        %1112 = vmatprep.subr.mxu0 0.0
        %1113 = vmatpush1.msra.mxu0 %v515
        %1114 = vmatprep.subr.mxu0 0.0
        %1115 = vmatpush1.msra.mxu0 %v516
        %1116 = vmatprep.subr.mxu0 0.0
        %1117 = vmatpush1.msra.mxu0 %v517
        %1118 = vmatprep.subr.mxu0 0.0
        %1119 = vmatpush1.msra.mxu0 %v518
        %1120 = vmatprep.subr.mxu0 0.0
        %1121 = vmatpush1.msra.mxu0 %v519
        %1122 = vmatprep.subr.mxu0 0.0
        %1123 = vmatpush1.msra.mxu0 %v520
        %1124 = vmatprep.subr.mxu0 0.0
        %1125 = vmatpush1.msra.mxu0 %v521
        %1126 = vmatprep.subr.mxu0 0.0
        %1127 = vmatpush1.msra.mxu0 %v522
        %1128 = vmatprep.subr.mxu0 0.0
        %1129 = vmatpush1.msra.mxu0 %v523
        %1130 = vmatprep.subr.mxu0 0.0
        %1131 = vmatpush1.msra.mxu0 %v524
        %1132 = vmatprep.subr.mxu0 0.0
        %1133 = vmatpush1.msra.mxu0 %v525
        %1134 = vmatprep.subr.mxu0 0.0
        %1135 = vmatpush1.msra.mxu0 %v526
        %1136 = vmatprep.subr.mxu0 0.0
        %1137 = vmatpush1.msra.mxu0 %v527
        %1138 = vmatprep.subr.mxu0 0.0
        %1139 = vmatpush1.msra.mxu0 %v528
        %1140 = vmatprep.subr.mxu0 0.0
        %1141 = vmatpush1.msra.mxu0 %v529
        %1142 = vmatprep.subr.mxu0 0.0
        %1143 = vmatpush1.msra.mxu0 %v530
        %1144 = vmatprep.subr.mxu0 0.0
        %1145 = vmatpush1.msra.mxu0 %v531
        %1146 = vmatprep.subr.mxu0 0.0
        %1147 = vmatpush1.msra.mxu0 %v532
        %1148 = vmatprep.subr.mxu0 0.0
        %1149 = vmatpush1.msra.mxu0 %v533
        %1150 = vmatprep.subr.mxu0 0.0
        %1151 = vmatpush1.msra.mxu0 %v534
        %1152 = vmatprep.subr.mxu0 0.0
        %1153 = vmatpush1.msra.mxu0 %v535
        %1154 = vmatprep.subr.mxu0 0.0
        %1155 = vmatpush1.msra.mxu0 %v536
        %1156 = vmatprep.subr.mxu0 0.0
        %1157 = vmatpush1.msra.mxu0 %v537
        %1158 = vmatprep.mubr.f32.mxu0 %v415
        %1159 = vmatmul.mubr.f32.gmra.mrb[0].mxu0 %v414
        %v1160 = vpop.f32.mrb[0].mxu0
        %v1161 = vadd.f32 %v1091, %v1160
        %v1162 = vpop.f32.mrb[0].mxu0
        %1163 = vdwg.mxu0
        %1164 = vmatprep.subr.mxu0 0.0
        %1165 = vmatpush1.msra.mxu0 %v538
        %1166 = vmatprep.subr.mxu0 0.0
        %1167 = vmatpush1.msra.mxu0 %v539
        %1168 = vmatprep.subr.mxu0 0.0
        %1169 = vmatpush1.msra.mxu0 %v540
        %1170 = vmatprep.subr.mxu0 0.0
        %1171 = vmatpush1.msra.mxu0 %v541
        %1172 = vmatprep.subr.mxu0 0.0
        %1173 = vmatpush1.msra.mxu0 %v542
        %1174 = vmatprep.subr.mxu0 0.0
        %1175 = vmatpush1.msra.mxu0 %v543
        %1176 = vmatprep.subr.mxu0 0.0
        %1177 = vmatpush1.msra.mxu0 %v544
        %1178 = vmatprep.subr.mxu0 0.0
        %1179 = vmatpush1.msra.mxu0 %v545
        %1180 = vmatprep.subr.mxu0 0.0
        %1181 = vmatpush1.msra.mxu0 %v546
        %1182 = vmatprep.subr.mxu0 0.0
        %1183 = vmatpush1.msra.mxu0 %v547
        %1184 = vmatprep.subr.mxu0 0.0
        %1185 = vmatpush1.msra.mxu0 %v548
        %1186 = vmatprep.subr.mxu0 0.0
        %1187 = vmatpush1.msra.mxu0 %v549
        %1188 = vmatprep.subr.mxu0 0.0
        %1189 = vmatpush1.msra.mxu0 %v550
        %1190 = vmatprep.subr.mxu0 0.0
        %1191 = vmatpush1.msra.mxu0 %v551
        %1192 = vmatprep.subr.mxu0 0.0
        %1193 = vmatpush1.msra.mxu0 %v552
        %1194 = vmatprep.subr.mxu0 0.0
        %1195 = vmatpush1.msra.mxu0 %v553
        %1196 = vmatprep.subr.mxu0 0.0
        %1197 = vmatpush1.msra.mxu0 %v554
        %1198 = vmatprep.subr.mxu0 0.0
        %1199 = vmatpush1.msra.mxu0 %v555
        %1200 = vmatprep.subr.mxu0 0.0
        %1201 = vmatpush1.msra.mxu0 %v556
        %1202 = vmatprep.subr.mxu0 0.0
        %1203 = vmatpush1.msra.mxu0 %v557
        %1204 = vmatprep.subr.mxu0 0.0
        %1205 = vmatpush1.msra.mxu0 %v558
        %1206 = vmatprep.subr.mxu0 0.0
        %1207 = vmatpush1.msra.mxu0 %v559
        %1208 = vmatprep.subr.mxu0 0.0
        %1209 = vmatpush1.msra.mxu0 %v560
        %1210 = vmatprep.subr.mxu0 0.0
        %1211 = vmatpush1.msra.mxu0 %v561
        %1212 = vmatprep.subr.mxu0 0.0
        %1213 = vmatpush1.msra.mxu0 %v562
        %1214 = vmatprep.subr.mxu0 0.0
        %1215 = vmatpush1.msra.mxu0 %v563
        %1216 = vmatprep.subr.mxu0 0.0
        %1217 = vmatpush1.msra.mxu0 %v564
        %1218 = vmatprep.subr.mxu0 0.0
        %1219 = vmatpush1.msra.mxu0 %v565
        %1220 = vmatprep.subr.mxu0 0.0
        %1221 = vmatpush1.msra.mxu0 %v566
        %1222 = vmatprep.subr.mxu0 0.0
        %1223 = vmatpush1.msra.mxu0 %v567
        %1224 = vmatprep.subr.mxu0 0.0
        %1225 = vmatpush1.msra.mxu0 %v568
        %1226 = vmatprep.subr.mxu0 0.0
        %1227 = vmatpush1.msra.mxu0 %v569
        %1228 = vmatprep.mubr.f32.mxu0 %v417
        %1229 = vmatmul.mubr.f32.gmra.mrb[0].mxu0 %v416
        %v1230 = vpop.f32.mrb[0].mxu0
        %v1231 = vadd.f32 %v1161, %v1230
        %v1232 = vpop.f32.mrb[0].mxu0
        %1233 = vdwg.mxu0
        %1234 = vmatprep.subr.mxu0 0.0
        %1235 = vmatpush1.msra.mxu0 %v570
        %1236 = vmatprep.subr.mxu0 0.0
        %1237 = vmatpush1.msra.mxu0 %v571
        %1238 = vmatprep.subr.mxu0 0.0
        %1239 = vmatpush1.msra.mxu0 %v572
        %1240 = vmatprep.subr.mxu0 0.0
        %1241 = vmatpush1.msra.mxu0 %v573
        %1242 = vmatprep.subr.mxu0 0.0
        %1243 = vmatpush1.msra.mxu0 %v574
        %1244 = vmatprep.subr.mxu0 0.0
        %1245 = vmatpush1.msra.mxu0 %v575
        %1246 = vmatprep.subr.mxu0 0.0
        %1247 = vmatpush1.msra.mxu0 %v576
        %1248 = vmatprep.subr.mxu0 0.0
        %1249 = vmatpush1.msra.mxu0 %v577
        %1250 = vmatprep.subr.mxu0 0.0
        %1251 = vmatpush1.msra.mxu0 %v578
        %1252 = vmatprep.subr.mxu0 0.0
        %1253 = vmatpush1.msra.mxu0 %v579
        %1254 = vmatprep.subr.mxu0 0.0
        %1255 = vmatpush1.msra.mxu0 %v580
        %1256 = vmatprep.subr.mxu0 0.0
        %1257 = vmatpush1.msra.mxu0 %v581
        %1258 = vmatprep.subr.mxu0 0.0
        %1259 = vmatpush1.msra.mxu0 %v582
        %1260 = vmatprep.subr.mxu0 0.0
        %1261 = vmatpush1.msra.mxu0 %v583
        %1262 = vmatprep.subr.mxu0 0.0
        %1263 = vmatpush1.msra.mxu0 %v584
        %1264 = vmatprep.subr.mxu0 0.0
        %1265 = vmatpush1.msra.mxu0 %v585
        %1266 = vmatprep.subr.mxu0 0.0
        %1267 = vmatpush1.msra.mxu0 %v586
        %1268 = vmatprep.subr.mxu0 0.0
        %1269 = vmatpush1.msra.mxu0 %v587
        %1270 = vmatprep.subr.mxu0 0.0
        %1271 = vmatpush1.msra.mxu0 %v588
        %1272 = vmatprep.subr.mxu0 0.0
        %1273 = vmatpush1.msra.mxu0 %v589
        %1274 = vmatprep.subr.mxu0 0.0
        %1275 = vmatpush1.msra.mxu0 %v590
        %1276 = vmatprep.subr.mxu0 0.0
        %1277 = vmatpush1.msra.mxu0 %v591
        %1278 = vmatprep.subr.mxu0 0.0
        %1279 = vmatpush1.msra.mxu0 %v592
        %1280 = vmatprep.subr.mxu0 0.0
        %1281 = vmatpush1.msra.mxu0 %v593
        %1282 = vmatprep.subr.mxu0 0.0
        %1283 = vmatpush1.msra.mxu0 %v594
        %1284 = vmatprep.subr.mxu0 0.0
        %1285 = vmatpush1.msra.mxu0 %v595
        %1286 = vmatprep.subr.mxu0 0.0
        %1287 = vmatpush1.msra.mxu0 %v596
        %1288 = vmatprep.subr.mxu0 0.0
        %1289 = vmatpush1.msra.mxu0 %v597
        %1290 = vmatprep.subr.mxu0 0.0
        %1291 = vmatpush1.msra.mxu0 %v598
        %1292 = vmatprep.subr.mxu0 0.0
        %1293 = vmatpush1.msra.mxu0 %v599
        %1294 = vmatprep.subr.mxu0 0.0
        %1295 = vmatpush1.msra.mxu0 %v600
        %1296 = vmatprep.subr.mxu0 0.0
        %1297 = vmatpush1.msra.mxu0 %v601
        %1298 = vmatprep.mubr.f32.mxu0 %v419
        %1299 = vmatmul.mubr.f32.gmra.mrb[0].mxu0 %v418
        %v1300 = vpop.f32.mrb[0].mxu0
        %v1301 = vadd.f32 %v1231, %v1300
        %v1302 = vpop.f32.mrb[0].mxu0
        %1303 = vdwg.mxu0
        %1304 = vmatprep.subr.mxu0 0.0
        %1305 = vmatpush1.msra.mxu0 %v602
        %1306 = vmatprep.subr.mxu0 0.0
        %1307 = vmatpush1.msra.mxu0 %v603
        %1308 = vmatprep.subr.mxu0 0.0
        %1309 = vmatpush1.msra.mxu0 %v604
        %1310 = vmatprep.subr.mxu0 0.0
        %1311 = vmatpush1.msra.mxu0 %v605
        %1312 = vmatprep.subr.mxu0 0.0
        %1313 = vmatpush1.msra.mxu0 %v606
        %1314 = vmatprep.subr.mxu0 0.0
        %1315 = vmatpush1.msra.mxu0 %v607
        %1316 = vmatprep.subr.mxu0 0.0
        %1317 = vmatpush1.msra.mxu0 %v608
        %1318 = vmatprep.subr.mxu0 0.0
        %1319 = vmatpush1.msra.mxu0 %v609
        %1320 = vmatprep.subr.mxu0 0.0
        %1321 = vmatpush1.msra.mxu0 %v610
        %1322 = vmatprep.subr.mxu0 0.0
        %1323 = vmatpush1.msra.mxu0 %v611
        %1324 = vmatprep.subr.mxu0 0.0
        %1325 = vmatpush1.msra.mxu0 %v612
        %1326 = vmatprep.subr.mxu0 0.0
        %1327 = vmatpush1.msra.mxu0 %v613
        %1328 = vmatprep.subr.mxu0 0.0
        %1329 = vmatpush1.msra.mxu0 %v614
        %1330 = vmatprep.subr.mxu0 0.0
        %1331 = vmatpush1.msra.mxu0 %v615
        %1332 = vmatprep.subr.mxu0 0.0
        %1333 = vmatpush1.msra.mxu0 %v616
        %1334 = vmatprep.subr.mxu0 0.0
        %1335 = vmatpush1.msra.mxu0 %v617
        %1336 = vmatprep.subr.mxu0 0.0
        %1337 = vmatpush1.msra.mxu0 %v618
        %1338 = vmatprep.subr.mxu0 0.0
        %1339 = vmatpush1.msra.mxu0 %v619
        %1340 = vmatprep.subr.mxu0 0.0
        %1341 = vmatpush1.msra.mxu0 %v620
        %1342 = vmatprep.subr.mxu0 0.0
        %1343 = vmatpush1.msra.mxu0 %v621
        %1344 = vmatprep.subr.mxu0 0.0
        %1345 = vmatpush1.msra.mxu0 %v622
        %1346 = vmatprep.subr.mxu0 0.0
        %1347 = vmatpush1.msra.mxu0 %v623
        %1348 = vmatprep.subr.mxu0 0.0
        %1349 = vmatpush1.msra.mxu0 %v624
        %1350 = vmatprep.subr.mxu0 0.0
        %1351 = vmatpush1.msra.mxu0 %v625
        %1352 = vmatprep.subr.mxu0 0.0
        %1353 = vmatpush1.msra.mxu0 %v626
        %1354 = vmatprep.subr.mxu0 0.0
        %1355 = vmatpush1.msra.mxu0 %v627
        %1356 = vmatprep.subr.mxu0 0.0
        %1357 = vmatpush1.msra.mxu0 %v628
        %1358 = vmatprep.subr.mxu0 0.0
        %1359 = vmatpush1.msra.mxu0 %v629
        %1360 = vmatprep.subr.mxu0 0.0
        %1361 = vmatpush1.msra.mxu0 %v630
        %1362 = vmatprep.subr.mxu0 0.0
        %1363 = vmatpush1.msra.mxu0 %v631
        %1364 = vmatprep.subr.mxu0 0.0
        %1365 = vmatpush1.msra.mxu0 %v632
        %1366 = vmatprep.subr.mxu0 0.0
        %1367 = vmatpush1.msra.mxu0 %v633
        %1368 = vmatprep.mubr.f32.mxu0 %v421
        %1369 = vmatmul.mubr.f32.gmra.mrb[0].mxu0 %v420
        %v1370 = vpop.f32.mrb[0].mxu0
        %v1371 = vadd.f32 %v1301, %v1370
        %v1372 = vpop.f32.mrb[0].mxu0
        %1373 = vdwg.mxu0
        %1374 = vmatprep.subr.mxu0 0.0
        %1375 = vmatpush1.msra.mxu0 %v634
        %1376 = vmatprep.subr.mxu0 0.0
        %1377 = vmatpush1.msra.mxu0 %v635
        %1378 = vmatprep.subr.mxu0 0.0
        %1379 = vmatpush1.msra.mxu0 %v636
        %1380 = vmatprep.subr.mxu0 0.0
        %1381 = vmatpush1.msra.mxu0 %v637
        %1382 = vmatprep.subr.mxu0 0.0
        %1383 = vmatpush1.msra.mxu0 %v638
        %1384 = vmatprep.subr.mxu0 0.0
        %1385 = vmatpush1.msra.mxu0 %v639
        %1386 = vmatprep.subr.mxu0 0.0
        %1387 = vmatpush1.msra.mxu0 %v640
        %1388 = vmatprep.subr.mxu0 0.0
        %1389 = vmatpush1.msra.mxu0 %v641
        %1390 = vmatprep.subr.mxu0 0.0
        %1391 = vmatpush1.msra.mxu0 %v642
        %1392 = vmatprep.subr.mxu0 0.0
        %1393 = vmatpush1.msra.mxu0 %v643
        %1394 = vmatprep.subr.mxu0 0.0
        %1395 = vmatpush1.msra.mxu0 %v644
        %1396 = vmatprep.subr.mxu0 0.0
        %1397 = vmatpush1.msra.mxu0 %v645
        %1398 = vmatprep.subr.mxu0 0.0
        %1399 = vmatpush1.msra.mxu0 %v646
        %1400 = vmatprep.subr.mxu0 0.0
        %1401 = vmatpush1.msra.mxu0 %v647
        %1402 = vmatprep.subr.mxu0 0.0
        %1403 = vmatpush1.msra.mxu0 %v648
        %1404 = vmatprep.subr.mxu0 0.0
        %1405 = vmatpush1.msra.mxu0 %v649
        %1406 = vmatprep.subr.mxu0 0.0
        %1407 = vmatpush1.msra.mxu0 %v650
        %1408 = vmatprep.subr.mxu0 0.0
        %1409 = vmatpush1.msra.mxu0 %v651
        %1410 = vmatprep.subr.mxu0 0.0
        %1411 = vmatpush1.msra.mxu0 %v652
        %1412 = vmatprep.subr.mxu0 0.0
        %1413 = vmatpush1.msra.mxu0 %v653
        %1414 = vmatprep.subr.mxu0 0.0
        %1415 = vmatpush1.msra.mxu0 %v654
        %1416 = vmatprep.subr.mxu0 0.0
        %1417 = vmatpush1.msra.mxu0 %v655
        %1418 = vmatprep.subr.mxu0 0.0
        %1419 = vmatpush1.msra.mxu0 %v656
        %1420 = vmatprep.subr.mxu0 0.0
        %1421 = vmatpush1.msra.mxu0 %v657
        %1422 = vmatprep.subr.mxu0 0.0
        %1423 = vmatpush1.msra.mxu0 %v658
        %1424 = vmatprep.subr.mxu0 0.0
        %1425 = vmatpush1.msra.mxu0 %v659
        %1426 = vmatprep.subr.mxu0 0.0
        %1427 = vmatpush1.msra.mxu0 %v660
        %1428 = vmatprep.subr.mxu0 0.0
        %1429 = vmatpush1.msra.mxu0 %v661
        %1430 = vmatprep.subr.mxu0 0.0
        %1431 = vmatpush1.msra.mxu0 %v662
        %1432 = vmatprep.subr.mxu0 0.0
        %1433 = vmatpush1.msra.mxu0 %v663
        %1434 = vmatprep.subr.mxu0 0.0
        %1435 = vmatpush1.msra.mxu0 %v664
        %1436 = vmatprep.subr.mxu0 0.0
        %1437 = vmatpush1.msra.mxu0 %v665
        %1438 = vmatprep.mubr.f32.mxu0 %v423
        %1439 = vmatmul.mubr.f32.gmra.mrb[0].mxu0 %v422
        %v1440 = vpop.f32.mrb[0].mxu0
        %v1441 = vadd.f32 %v1371, %v1440
        %v1442 = vpop.f32.mrb[0].mxu0
        %1443 = vdwg.mxu0
        %1444 = vmatprep.subr.mxu0 0.0
        %1445 = vmatpush1.msra.mxu0 %v666
        %1446 = vmatprep.subr.mxu0 0.0
        %1447 = vmatpush1.msra.mxu0 %v667
        %1448 = vmatprep.subr.mxu0 0.0
        %1449 = vmatpush1.msra.mxu0 %v668
        %1450 = vmatprep.subr.mxu0 0.0
        %1451 = vmatpush1.msra.mxu0 %v669
        %1452 = vmatprep.subr.mxu0 0.0
        %1453 = vmatpush1.msra.mxu0 %v670
        %1454 = vmatprep.subr.mxu0 0.0
        %1455 = vmatpush1.msra.mxu0 %v671
        %1456 = vmatprep.subr.mxu0 0.0
        %1457 = vmatpush1.msra.mxu0 %v672
        %1458 = vmatprep.subr.mxu0 0.0
        %1459 = vmatpush1.msra.mxu0 %v673
        %1460 = vmatprep.subr.mxu0 0.0
        %1461 = vmatpush1.msra.mxu0 %v674
        %1462 = vmatprep.subr.mxu0 0.0
        %1463 = vmatpush1.msra.mxu0 %v675
        %1464 = vmatprep.subr.mxu0 0.0
        %1465 = vmatpush1.msra.mxu0 %v676
        %1466 = vmatprep.subr.mxu0 0.0
        %1467 = vmatpush1.msra.mxu0 %v677
        %1468 = vmatprep.subr.mxu0 0.0
        %1469 = vmatpush1.msra.mxu0 %v678
        %1470 = vmatprep.subr.mxu0 0.0
        %1471 = vmatpush1.msra.mxu0 %v679
        %1472 = vmatprep.subr.mxu0 0.0
        %1473 = vmatpush1.msra.mxu0 %v680
        %1474 = vmatprep.subr.mxu0 0.0
        %1475 = vmatpush1.msra.mxu0 %v681
        %1476 = vmatprep.subr.mxu0 0.0
        %1477 = vmatpush1.msra.mxu0 %v682
        %1478 = vmatprep.subr.mxu0 0.0
        %1479 = vmatpush1.msra.mxu0 %v683
        %1480 = vmatprep.subr.mxu0 0.0
        %1481 = vmatpush1.msra.mxu0 %v684
        %1482 = vmatprep.subr.mxu0 0.0
        %1483 = vmatpush1.msra.mxu0 %v685
        %1484 = vmatprep.subr.mxu0 0.0
        %1485 = vmatpush1.msra.mxu0 %v686
        %1486 = vmatprep.subr.mxu0 0.0
        %1487 = vmatpush1.msra.mxu0 %v687
        %1488 = vmatprep.subr.mxu0 0.0
        %1489 = vmatpush1.msra.mxu0 %v688
        %1490 = vmatprep.subr.mxu0 0.0
        %1491 = vmatpush1.msra.mxu0 %v689
        %1492 = vmatprep.subr.mxu0 0.0
        %1493 = vmatpush1.msra.mxu0 %v690
        %1494 = vmatprep.subr.mxu0 0.0
        %1495 = vmatpush1.msra.mxu0 %v691
        %1496 = vmatprep.subr.mxu0 0.0
        %1497 = vmatpush1.msra.mxu0 %v692
        %1498 = vmatprep.subr.mxu0 0.0
        %1499 = vmatpush1.msra.mxu0 %v693
        %1500 = vmatprep.subr.mxu0 0.0
        %1501 = vmatpush1.msra.mxu0 %v694
        %1502 = vmatprep.subr.mxu0 0.0
        %1503 = vmatpush1.msra.mxu0 %v695
        %1504 = vmatprep.subr.mxu0 0.0
        %1505 = vmatpush1.msra.mxu0 %v696
        %1506 = vmatprep.subr.mxu0 0.0
        %1507 = vmatpush1.msra.mxu0 %v697
        %1508 = vmatprep.mubr.f32.mxu0 %v425
        %1509 = vmatmul.mubr.f32.gmra.mrb[0].mxu0 %v424
        %v1510 = vpop.f32.mrb[0].mxu0
        %v1511 = vadd.f32 %v1441, %v1510
        %v1512 = vpop.f32.mrb[0].mxu0
        %1513 = vdwg.mxu0
        %1514 = vmatprep.subr.mxu0 0.0
        %1515 = vmatpush1.msra.mxu0 %v698
        %1516 = vmatprep.subr.mxu0 0.0
        %1517 = vmatpush1.msra.mxu0 %v699
        %1518 = vmatprep.subr.mxu0 0.0
        %1519 = vmatpush1.msra.mxu0 %v700
        %1520 = vmatprep.subr.mxu0 0.0
        %1521 = vmatpush1.msra.mxu0 %v701
        %1522 = vmatprep.subr.mxu0 0.0
        %1523 = vmatpush1.msra.mxu0 %v702
        %1524 = vmatprep.subr.mxu0 0.0
        %1525 = vmatpush1.msra.mxu0 %v703
        %1526 = vmatprep.subr.mxu0 0.0
        %1527 = vmatpush1.msra.mxu0 %v704
        %1528 = vmatprep.subr.mxu0 0.0
        %1529 = vmatpush1.msra.mxu0 %v705
        %1530 = vmatprep.subr.mxu0 0.0
        %1531 = vmatpush1.msra.mxu0 %v706
        %1532 = vmatprep.subr.mxu0 0.0
        %1533 = vmatpush1.msra.mxu0 %v707
        %1534 = vmatprep.subr.mxu0 0.0
        %1535 = vmatpush1.msra.mxu0 %v708
        %1536 = vmatprep.subr.mxu0 0.0
        %1537 = vmatpush1.msra.mxu0 %v709
        %1538 = vmatprep.subr.mxu0 0.0
        %1539 = vmatpush1.msra.mxu0 %v710
        %1540 = vmatprep.subr.mxu0 0.0
        %1541 = vmatpush1.msra.mxu0 %v711
        %1542 = vmatprep.subr.mxu0 0.0
        %1543 = vmatpush1.msra.mxu0 %v712
        %1544 = vmatprep.subr.mxu0 0.0
        %1545 = vmatpush1.msra.mxu0 %v713
        %1546 = vmatprep.subr.mxu0 0.0
        %1547 = vmatpush1.msra.mxu0 %v714
        %1548 = vmatprep.subr.mxu0 0.0
        %1549 = vmatpush1.msra.mxu0 %v715
        %1550 = vmatprep.subr.mxu0 0.0
        %1551 = vmatpush1.msra.mxu0 %v716
        %1552 = vmatprep.subr.mxu0 0.0
        %1553 = vmatpush1.msra.mxu0 %v717
        %1554 = vmatprep.subr.mxu0 0.0
        %1555 = vmatpush1.msra.mxu0 %v718
        %1556 = vmatprep.subr.mxu0 0.0
        %1557 = vmatpush1.msra.mxu0 %v719
        %1558 = vmatprep.subr.mxu0 0.0
        %1559 = vmatpush1.msra.mxu0 %v720
        %1560 = vmatprep.subr.mxu0 0.0
        %1561 = vmatpush1.msra.mxu0 %v721
        %1562 = vmatprep.subr.mxu0 0.0
        %1563 = vmatpush1.msra.mxu0 %v722
        %1564 = vmatprep.subr.mxu0 0.0
        %1565 = vmatpush1.msra.mxu0 %v723
        %1566 = vmatprep.subr.mxu0 0.0
        %1567 = vmatpush1.msra.mxu0 %v724
        %1568 = vmatprep.subr.mxu0 0.0
        %1569 = vmatpush1.msra.mxu0 %v725
        %1570 = vmatprep.subr.mxu0 0.0
        %1571 = vmatpush1.msra.mxu0 %v726
        %1572 = vmatprep.subr.mxu0 0.0
        %1573 = vmatpush1.msra.mxu0 %v727
        %1574 = vmatprep.subr.mxu0 0.0
        %1575 = vmatpush1.msra.mxu0 %v728
        %1576 = vmatprep.subr.mxu0 0.0
        %1577 = vmatpush1.msra.mxu0 %v729
        %1578 = vmatprep.mubr.f32.mxu0 %v427
        %1579 = vmatmul.mubr.f32.gmra.mrb[0].mxu0 %v426
        %v1580 = vpop.f32.mrb[0].mxu0
        %v1581 = vadd.f32 %v1511, %v1580
        %v1582 = vpop.f32.mrb[0].mxu0
        %1583 = vdwg.mxu0
        %1584 = vmatprep.subr.mxu0 0.0
        %1585 = vmatpush1.msra.mxu0 %v730
        %1586 = vmatprep.subr.mxu0 0.0
        %1587 = vmatpush1.msra.mxu0 %v731
        %1588 = vmatprep.subr.mxu0 0.0
        %1589 = vmatpush1.msra.mxu0 %v732
        %1590 = vmatprep.subr.mxu0 0.0
        %1591 = vmatpush1.msra.mxu0 %v733
        %1592 = vmatprep.subr.mxu0 0.0
        %1593 = vmatpush1.msra.mxu0 %v734
        %1594 = vmatprep.subr.mxu0 0.0
        %1595 = vmatpush1.msra.mxu0 %v735
        %1596 = vmatprep.subr.mxu0 0.0
        %1597 = vmatpush1.msra.mxu0 %v736
        %1598 = vmatprep.subr.mxu0 0.0
        %1599 = vmatpush1.msra.mxu0 %v737
        %1600 = vmatprep.subr.mxu0 0.0
        %1601 = vmatpush1.msra.mxu0 %v738
        %1602 = vmatprep.subr.mxu0 0.0
        %1603 = vmatpush1.msra.mxu0 %v739
        %1604 = vmatprep.subr.mxu0 0.0
        %1605 = vmatpush1.msra.mxu0 %v740
        %1606 = vmatprep.subr.mxu0 0.0
        %1607 = vmatpush1.msra.mxu0 %v741
        %1608 = vmatprep.subr.mxu0 0.0
        %1609 = vmatpush1.msra.mxu0 %v742
        %1610 = vmatprep.subr.mxu0 0.0
        %1611 = vmatpush1.msra.mxu0 %v743
        %1612 = vmatprep.subr.mxu0 0.0
        %1613 = vmatpush1.msra.mxu0 %v744
        %1614 = vmatprep.subr.mxu0 0.0
        %1615 = vmatpush1.msra.mxu0 %v745
        %1616 = vmatprep.subr.mxu0 0.0
        %1617 = vmatpush1.msra.mxu0 %v746
        %1618 = vmatprep.subr.mxu0 0.0
        %1619 = vmatpush1.msra.mxu0 %v747
        %1620 = vmatprep.subr.mxu0 0.0
        %1621 = vmatpush1.msra.mxu0 %v748
        %1622 = vmatprep.subr.mxu0 0.0
        %1623 = vmatpush1.msra.mxu0 %v749
        %1624 = vmatprep.subr.mxu0 0.0
        %1625 = vmatpush1.msra.mxu0 %v750
        %1626 = vmatprep.subr.mxu0 0.0
        %1627 = vmatpush1.msra.mxu0 %v751
        %1628 = vmatprep.subr.mxu0 0.0
        %1629 = vmatpush1.msra.mxu0 %v752
        %1630 = vmatprep.subr.mxu0 0.0
        %1631 = vmatpush1.msra.mxu0 %v753
        %1632 = vmatprep.subr.mxu0 0.0
        %1633 = vmatpush1.msra.mxu0 %v754
        %1634 = vmatprep.subr.mxu0 0.0
        %1635 = vmatpush1.msra.mxu0 %v755
        %1636 = vmatprep.subr.mxu0 0.0
        %1637 = vmatpush1.msra.mxu0 %v756
        %1638 = vmatprep.subr.mxu0 0.0
        %1639 = vmatpush1.msra.mxu0 %v757
        %1640 = vmatprep.subr.mxu0 0.0
        %1641 = vmatpush1.msra.mxu0 %v758
        %1642 = vmatprep.subr.mxu0 0.0
        %1643 = vmatpush1.msra.mxu0 %v759
        %1644 = vmatprep.subr.mxu0 0.0
        %1645 = vmatpush1.msra.mxu0 %v760
        %1646 = vmatprep.subr.mxu0 0.0
        %1647 = vmatpush1.msra.mxu0 %v761
        %1648 = vmatprep.mubr.f32.mxu0 %v429
        %1649 = vmatmul.mubr.f32.gmra.mrb[0].mxu0 %v428
        %v1650 = vpop.f32.mrb[0].mxu0
        %v1651 = vadd.f32 %v1581, %v1650
        %v1652 = vpop.f32.mrb[0].mxu0
        %1653 = vdwg.mxu0
        %1654 = vmatprep.subr.mxu0 0.0
        %1655 = vmatpush1.msra.mxu0 %v762
        %1656 = vmatprep.subr.mxu0 0.0
        %1657 = vmatpush1.msra.mxu0 %v763
        %1658 = vmatprep.subr.mxu0 0.0
        %1659 = vmatpush1.msra.mxu0 %v764
        %1660 = vmatprep.subr.mxu0 0.0
        %1661 = vmatpush1.msra.mxu0 %v765
        %1662 = vmatprep.subr.mxu0 0.0
        %1663 = vmatpush1.msra.mxu0 %v766
        %1664 = vmatprep.subr.mxu0 0.0
        %1665 = vmatpush1.msra.mxu0 %v767
        %1666 = vmatprep.subr.mxu0 0.0
        %1667 = vmatpush1.msra.mxu0 %v768
        %1668 = vmatprep.subr.mxu0 0.0
        %1669 = vmatpush1.msra.mxu0 %v769
        %1670 = vmatprep.subr.mxu0 0.0
        %1671 = vmatpush1.msra.mxu0 %v770
        %1672 = vmatprep.subr.mxu0 0.0
        %1673 = vmatpush1.msra.mxu0 %v771
        %1674 = vmatprep.subr.mxu0 0.0
        %1675 = vmatpush1.msra.mxu0 %v772
        %1676 = vmatprep.subr.mxu0 0.0
        %1677 = vmatpush1.msra.mxu0 %v773
        %1678 = vmatprep.subr.mxu0 0.0
        %1679 = vmatpush1.msra.mxu0 %v774
        %1680 = vmatprep.subr.mxu0 0.0
        %1681 = vmatpush1.msra.mxu0 %v775
        %1682 = vmatprep.subr.mxu0 0.0
        %1683 = vmatpush1.msra.mxu0 %v776
        %1684 = vmatprep.subr.mxu0 0.0
        %1685 = vmatpush1.msra.mxu0 %v777
        %1686 = vmatprep.subr.mxu0 0.0
        %1687 = vmatpush1.msra.mxu0 %v778
        %1688 = vmatprep.subr.mxu0 0.0
        %1689 = vmatpush1.msra.mxu0 %v779
        %1690 = vmatprep.subr.mxu0 0.0
        %1691 = vmatpush1.msra.mxu0 %v780
        %1692 = vmatprep.subr.mxu0 0.0
        %1693 = vmatpush1.msra.mxu0 %v781
        %1694 = vmatprep.subr.mxu0 0.0
        %1695 = vmatpush1.msra.mxu0 %v782
        %1696 = vmatprep.subr.mxu0 0.0
        %1697 = vmatpush1.msra.mxu0 %v783
        %1698 = vmatprep.subr.mxu0 0.0
        %1699 = vmatpush1.msra.mxu0 %v784
        %1700 = vmatprep.subr.mxu0 0.0
        %1701 = vmatpush1.msra.mxu0 %v785
        %1702 = vmatprep.subr.mxu0 0.0
        %1703 = vmatpush1.msra.mxu0 %v786
        %1704 = vmatprep.subr.mxu0 0.0
        %1705 = vmatpush1.msra.mxu0 %v787
        %1706 = vmatprep.subr.mxu0 0.0
        %1707 = vmatpush1.msra.mxu0 %v788
        %1708 = vmatprep.subr.mxu0 0.0
        %1709 = vmatpush1.msra.mxu0 %v789
        %1710 = vmatprep.subr.mxu0 0.0
        %1711 = vmatpush1.msra.mxu0 %v790
        %1712 = vmatprep.subr.mxu0 0.0
        %1713 = vmatpush1.msra.mxu0 %v791
        %1714 = vmatprep.subr.mxu0 0.0
        %1715 = vmatpush1.msra.mxu0 %v792
        %1716 = vmatprep.subr.mxu0 0.0
        %1717 = vmatpush1.msra.mxu0 %v793
        %1718 = vmatprep.mubr.f32.mxu0 %v431
        %1719 = vmatmul.mubr.f32.gmra.mrb[0].mxu0 %v430
        %v1720 = vpop.f32.mrb[0].mxu0
        %v1721 = vadd.f32 %v1651, %v1720
        %v1722 = vpop.f32.mrb[0].mxu0
        %1723 = vdwg.mxu0
        %1724 = vmatprep.subr.mxu0 0.0
        %1725 = vmatpush1.msra.mxu0 %v794
        %1726 = vmatprep.subr.mxu0 0.0
        %1727 = vmatpush1.msra.mxu0 %v795
        %1728 = vmatprep.subr.mxu0 0.0
        %1729 = vmatpush1.msra.mxu0 %v796
        %1730 = vmatprep.subr.mxu0 0.0
        %1731 = vmatpush1.msra.mxu0 %v797
        %1732 = vmatprep.subr.mxu0 0.0
        %1733 = vmatpush1.msra.mxu0 %v798
        %1734 = vmatprep.subr.mxu0 0.0
        %1735 = vmatpush1.msra.mxu0 %v799
        %1736 = vmatprep.subr.mxu0 0.0
        %1737 = vmatpush1.msra.mxu0 %v800
        %1738 = vmatprep.subr.mxu0 0.0
        %1739 = vmatpush1.msra.mxu0 %v801
        %1740 = vmatprep.subr.mxu0 0.0
        %1741 = vmatpush1.msra.mxu0 %v802
        %1742 = vmatprep.subr.mxu0 0.0
        %1743 = vmatpush1.msra.mxu0 %v803
        %1744 = vmatprep.subr.mxu0 0.0
        %1745 = vmatpush1.msra.mxu0 %v804
        %1746 = vmatprep.subr.mxu0 0.0
        %1747 = vmatpush1.msra.mxu0 %v805
        %1748 = vmatprep.subr.mxu0 0.0
        %1749 = vmatpush1.msra.mxu0 %v806
        %1750 = vmatprep.subr.mxu0 0.0
        %1751 = vmatpush1.msra.mxu0 %v807
        %1752 = vmatprep.subr.mxu0 0.0
        %1753 = vmatpush1.msra.mxu0 %v808
        %1754 = vmatprep.subr.mxu0 0.0
        %1755 = vmatpush1.msra.mxu0 %v809
        %1756 = vmatprep.subr.mxu0 0.0
        %1757 = vmatpush1.msra.mxu0 %v810
        %1758 = vmatprep.subr.mxu0 0.0
        %1759 = vmatpush1.msra.mxu0 %v811
        %1760 = vmatprep.subr.mxu0 0.0
        %1761 = vmatpush1.msra.mxu0 %v812
        %1762 = vmatprep.subr.mxu0 0.0
        %1763 = vmatpush1.msra.mxu0 %v813
        %1764 = vmatprep.subr.mxu0 0.0
        %1765 = vmatpush1.msra.mxu0 %v814
        %1766 = vmatprep.subr.mxu0 0.0
        %1767 = vmatpush1.msra.mxu0 %v815
        %1768 = vmatprep.subr.mxu0 0.0
        %1769 = vmatpush1.msra.mxu0 %v816
        %1770 = vmatprep.subr.mxu0 0.0
        %1771 = vmatpush1.msra.mxu0 %v817
        %1772 = vmatprep.subr.mxu0 0.0
        %1773 = vmatpush1.msra.mxu0 %v818
        %1774 = vmatprep.subr.mxu0 0.0
        %1775 = vmatpush1.msra.mxu0 %v819
        %1776 = vmatprep.subr.mxu0 0.0
        %1777 = vmatpush1.msra.mxu0 %v820
        %1778 = vmatprep.subr.mxu0 0.0
        %1779 = vmatpush1.msra.mxu0 %v821
        %1780 = vmatprep.subr.mxu0 0.0
        %1781 = vmatpush1.msra.mxu0 %v822
        %1782 = vmatprep.subr.mxu0 0.0
        %1783 = vmatpush1.msra.mxu0 %v823
        %1784 = vmatprep.subr.mxu0 0.0
        %1785 = vmatpush1.msra.mxu0 %v824
        %1786 = vmatprep.subr.mxu0 0.0
        %1787 = vmatpush1.msra.mxu0 %v825
        %1788 = vmatprep.mubr.f32.mxu0 %v433
        %1789 = vmatmul.mubr.f32.gmra.mrb[0].mxu0 %v432
        %v1790 = vpop.f32.mrb[0].mxu0
        %v1791 = vadd.f32 %v1721, %v1790
        %v1792 = vpop.f32.mrb[0].mxu0
        %1793 = vdwg.mxu0
        %1794 = vmatprep.subr.mxu0 0.0
        %1795 = vmatpush1.msra.mxu0 %v826
        %1796 = vmatprep.subr.mxu0 0.0
        %1797 = vmatpush1.msra.mxu0 %v827
        %1798 = vmatprep.subr.mxu0 0.0
        %1799 = vmatpush1.msra.mxu0 %v828
        %1800 = vmatprep.subr.mxu0 0.0
        %1801 = vmatpush1.msra.mxu0 %v829
        %1802 = vmatprep.subr.mxu0 0.0
        %1803 = vmatpush1.msra.mxu0 %v830
        %1804 = vmatprep.subr.mxu0 0.0
        %1805 = vmatpush1.msra.mxu0 %v831
        %1806 = vmatprep.subr.mxu0 0.0
        %1807 = vmatpush1.msra.mxu0 %v832
        %1808 = vmatprep.subr.mxu0 0.0
        %1809 = vmatpush1.msra.mxu0 %v833
        %1810 = vmatprep.subr.mxu0 0.0
        %1811 = vmatpush1.msra.mxu0 %v834
        %1812 = vmatprep.subr.mxu0 0.0
        %1813 = vmatpush1.msra.mxu0 %v835
        %1814 = vmatprep.subr.mxu0 0.0
        %1815 = vmatpush1.msra.mxu0 %v836
        %1816 = vmatprep.subr.mxu0 0.0
        %1817 = vmatpush1.msra.mxu0 %v837
        %1818 = vmatprep.subr.mxu0 0.0
        %1819 = vmatpush1.msra.mxu0 %v838
        %1820 = vmatprep.subr.mxu0 0.0
        %1821 = vmatpush1.msra.mxu0 %v839
        %1822 = vmatprep.subr.mxu0 0.0
        %1823 = vmatpush1.msra.mxu0 %v840
        %1824 = vmatprep.subr.mxu0 0.0
        %1825 = vmatpush1.msra.mxu0 %v841
        %1826 = vmatprep.subr.mxu0 0.0
        %1827 = vmatpush1.msra.mxu0 %v842
        %1828 = vmatprep.subr.mxu0 0.0
        %1829 = vmatpush1.msra.mxu0 %v843
        %1830 = vmatprep.subr.mxu0 0.0
        %1831 = vmatpush1.msra.mxu0 %v844
        %1832 = vmatprep.subr.mxu0 0.0
        %1833 = vmatpush1.msra.mxu0 %v845
        %1834 = vmatprep.subr.mxu0 0.0
        %1835 = vmatpush1.msra.mxu0 %v846
        %1836 = vmatprep.subr.mxu0 0.0
        %1837 = vmatpush1.msra.mxu0 %v847
        %1838 = vmatprep.subr.mxu0 0.0
        %1839 = vmatpush1.msra.mxu0 %v848
        %1840 = vmatprep.subr.mxu0 0.0
        %1841 = vmatpush1.msra.mxu0 %v849
        %1842 = vmatprep.subr.mxu0 0.0
        %1843 = vmatpush1.msra.mxu0 %v850
        %1844 = vmatprep.subr.mxu0 0.0
        %1845 = vmatpush1.msra.mxu0 %v851
        %1846 = vmatprep.subr.mxu0 0.0
        %1847 = vmatpush1.msra.mxu0 %v852
        %1848 = vmatprep.subr.mxu0 0.0
        %1849 = vmatpush1.msra.mxu0 %v853
        %1850 = vmatprep.subr.mxu0 0.0
        %1851 = vmatpush1.msra.mxu0 %v854
        %1852 = vmatprep.subr.mxu0 0.0
        %1853 = vmatpush1.msra.mxu0 %v855
        %1854 = vmatprep.subr.mxu0 0.0
        %1855 = vmatpush1.msra.mxu0 %v856
        %1856 = vmatprep.subr.mxu0 0.0
        %1857 = vmatpush1.msra.mxu0 %v857
        %1858 = vmatprep.mubr.f32.mxu0 %v435
        %1859 = vmatmul.mubr.f32.gmra.mrb[0].mxu0 %v434
        %v1860 = vpop.f32.mrb[0].mxu0
        %v1861 = vadd.f32 %v1791, %v1860
        %v1862 = vpop.f32.mrb[0].mxu0
        %1863 = vdwg.mxu0
        %1864 = vmatprep.subr.mxu0 0.0
        %1865 = vmatpush1.msra.mxu0 %v858
        %1866 = vmatprep.subr.mxu0 0.0
        %1867 = vmatpush1.msra.mxu0 %v859
        %1868 = vmatprep.subr.mxu0 0.0
        %1869 = vmatpush1.msra.mxu0 %v860
        %1870 = vmatprep.subr.mxu0 0.0
        %1871 = vmatpush1.msra.mxu0 %v861
        %1872 = vmatprep.subr.mxu0 0.0
        %1873 = vmatpush1.msra.mxu0 %v862
        %1874 = vmatprep.subr.mxu0 0.0
        %1875 = vmatpush1.msra.mxu0 %v863
        %1876 = vmatprep.subr.mxu0 0.0
        %1877 = vmatpush1.msra.mxu0 %v864
        %1878 = vmatprep.subr.mxu0 0.0
        %1879 = vmatpush1.msra.mxu0 %v865
        %1880 = vmatprep.subr.mxu0 0.0
        %1881 = vmatpush1.msra.mxu0 %v866
        %1882 = vmatprep.subr.mxu0 0.0
        %1883 = vmatpush1.msra.mxu0 %v867
        %1884 = vmatprep.subr.mxu0 0.0
        %1885 = vmatpush1.msra.mxu0 %v868
        %1886 = vmatprep.subr.mxu0 0.0
        %1887 = vmatpush1.msra.mxu0 %v869
        %1888 = vmatprep.subr.mxu0 0.0
        %1889 = vmatpush1.msra.mxu0 %v870
        %1890 = vmatprep.subr.mxu0 0.0
        %1891 = vmatpush1.msra.mxu0 %v871
        %1892 = vmatprep.subr.mxu0 0.0
        %1893 = vmatpush1.msra.mxu0 %v872
        %1894 = vmatprep.subr.mxu0 0.0
        %1895 = vmatpush1.msra.mxu0 %v873
        %1896 = vmatprep.subr.mxu0 0.0
        %1897 = vmatpush1.msra.mxu0 %v874
        %1898 = vmatprep.subr.mxu0 0.0
        %1899 = vmatpush1.msra.mxu0 %v875
        %1900 = vmatprep.subr.mxu0 0.0
        %1901 = vmatpush1.msra.mxu0 %v876
        %1902 = vmatprep.subr.mxu0 0.0
        %1903 = vmatpush1.msra.mxu0 %v877
        %1904 = vmatprep.subr.mxu0 0.0
        %1905 = vmatpush1.msra.mxu0 %v878
        %1906 = vmatprep.subr.mxu0 0.0
        %1907 = vmatpush1.msra.mxu0 %v879
        %1908 = vmatprep.subr.mxu0 0.0
        %1909 = vmatpush1.msra.mxu0 %v880
        %1910 = vmatprep.subr.mxu0 0.0
        %1911 = vmatpush1.msra.mxu0 %v881
        %1912 = vmatprep.subr.mxu0 0.0
        %1913 = vmatpush1.msra.mxu0 %v882
        %1914 = vmatprep.subr.mxu0 0.0
        %1915 = vmatpush1.msra.mxu0 %v883
        %1916 = vmatprep.subr.mxu0 0.0
        %1917 = vmatpush1.msra.mxu0 %v884
        %1918 = vmatprep.subr.mxu0 0.0
        %1919 = vmatpush1.msra.mxu0 %v885
        %1920 = vmatprep.subr.mxu0 0.0
        %1921 = vmatpush1.msra.mxu0 %v886
        %1922 = vmatprep.subr.mxu0 0.0
        %1923 = vmatpush1.msra.mxu0 %v887
        %1924 = vmatprep.subr.mxu0 0.0
        %1925 = vmatpush1.msra.mxu0 %v888
        %1926 = vmatprep.subr.mxu0 0.0
        %1927 = vmatpush1.msra.mxu0 %v889
        %1928 = vmatprep.mubr.f32.mxu0 %v437
        %1929 = vmatmul.mubr.f32.gmra.mrb[0].mxu0 %v436
        %v1930 = vpop.f32.mrb[0].mxu0
        %v1931 = vadd.f32 %v1861, %v1930
        %v1932 = vpop.f32.mrb[0].mxu0
        %1933 = vdwg.mxu0
        %1934 = vmatprep.subr.mxu0 0.0
        %1935 = vmatpush1.msra.mxu0 %v890
        %1936 = vmatprep.subr.mxu0 0.0
        %1937 = vmatpush1.msra.mxu0 %v891
        %1938 = vmatprep.subr.mxu0 0.0
        %1939 = vmatpush1.msra.mxu0 %v892
        %1940 = vmatprep.subr.mxu0 0.0
        %1941 = vmatpush1.msra.mxu0 %v893
        %1942 = vmatprep.subr.mxu0 0.0
        %1943 = vmatpush1.msra.mxu0 %v894
        %1944 = vmatprep.subr.mxu0 0.0
        %1945 = vmatpush1.msra.mxu0 %v895
        %1946 = vmatprep.subr.mxu0 0.0
        %1947 = vmatpush1.msra.mxu0 %v896
        %1948 = vmatprep.subr.mxu0 0.0
        %1949 = vmatpush1.msra.mxu0 %v897
        %1950 = vmatprep.subr.mxu0 0.0
        %1951 = vmatpush1.msra.mxu0 %v898
        %1952 = vmatprep.subr.mxu0 0.0
        %1953 = vmatpush1.msra.mxu0 %v899
        %1954 = vmatprep.subr.mxu0 0.0
        %1955 = vmatpush1.msra.mxu0 %v900
        %1956 = vmatprep.subr.mxu0 0.0
        %1957 = vmatpush1.msra.mxu0 %v901
        %1958 = vmatprep.subr.mxu0 0.0
        %1959 = vmatpush1.msra.mxu0 %v902
        %1960 = vmatprep.subr.mxu0 0.0
        %1961 = vmatpush1.msra.mxu0 %v903
        %1962 = vmatprep.subr.mxu0 0.0
        %1963 = vmatpush1.msra.mxu0 %v904
        %1964 = vmatprep.subr.mxu0 0.0
        %1965 = vmatpush1.msra.mxu0 %v905
        %1966 = vmatprep.subr.mxu0 0.0
        %1967 = vmatpush1.msra.mxu0 %v906
        %1968 = vmatprep.subr.mxu0 0.0
        %1969 = vmatpush1.msra.mxu0 %v907
        %1970 = vmatprep.subr.mxu0 0.0
        %1971 = vmatpush1.msra.mxu0 %v908
        %1972 = vmatprep.subr.mxu0 0.0
        %1973 = vmatpush1.msra.mxu0 %v909
        %1974 = vmatprep.subr.mxu0 0.0
        %1975 = vmatpush1.msra.mxu0 %v910
        %1976 = vmatprep.subr.mxu0 0.0
        %1977 = vmatpush1.msra.mxu0 %v911
        %1978 = vmatprep.subr.mxu0 0.0
        %1979 = vmatpush1.msra.mxu0 %v912
        %1980 = vmatprep.subr.mxu0 0.0
        %1981 = vmatpush1.msra.mxu0 %v913
        %1982 = vmatprep.subr.mxu0 0.0
        %1983 = vmatpush1.msra.mxu0 %v914
        %1984 = vmatprep.subr.mxu0 0.0
        %1985 = vmatpush1.msra.mxu0 %v915
        %1986 = vmatprep.subr.mxu0 0.0
        %1987 = vmatpush1.msra.mxu0 %v916
        %1988 = vmatprep.subr.mxu0 0.0
        %1989 = vmatpush1.msra.mxu0 %v917
        %1990 = vmatprep.subr.mxu0 0.0
        %1991 = vmatpush1.msra.mxu0 %v918
        %1992 = vmatprep.subr.mxu0 0.0
        %1993 = vmatpush1.msra.mxu0 %v919
        %1994 = vmatprep.subr.mxu0 0.0
        %1995 = vmatpush1.msra.mxu0 %v920
        %1996 = vmatprep.subr.mxu0 0.0
        %1997 = vmatpush1.msra.mxu0 %v921
        %1998 = vmatprep.mubr.f32.mxu0 %v439
        %1999 = vmatmul.mubr.f32.gmra.mrb[0].mxu0 %v438
        %v2000 = vpop.f32.mrb[0].mxu0
        %v2001 = vadd.f32 %v1931, %v2000
        %v2002 = vpop.f32.mrb[0].mxu0
        %2003 = vdwg.mxu0
        %2004 = vmatprep.subr.mxu0 0.0
        %2005 = vmatpush1.msra.mxu0 %v922
        %2006 = vmatprep.subr.mxu0 0.0
        %2007 = vmatpush1.msra.mxu0 %v923
        %2008 = vmatprep.subr.mxu0 0.0
        %2009 = vmatpush1.msra.mxu0 %v924
        %2010 = vmatprep.subr.mxu0 0.0
        %2011 = vmatpush1.msra.mxu0 %v925
        %2012 = vmatprep.subr.mxu0 0.0
        %2013 = vmatpush1.msra.mxu0 %v926
        %2014 = vmatprep.subr.mxu0 0.0
        %2015 = vmatpush1.msra.mxu0 %v927
        %2016 = vmatprep.subr.mxu0 0.0
        %2017 = vmatpush1.msra.mxu0 %v928
        %2018 = vmatprep.subr.mxu0 0.0
        %2019 = vmatpush1.msra.mxu0 %v929
        %2020 = vmatprep.subr.mxu0 0.0
        %2021 = vmatpush1.msra.mxu0 %v930
        %2022 = vmatprep.subr.mxu0 0.0
        %2023 = vmatpush1.msra.mxu0 %v931
        %2024 = vmatprep.subr.mxu0 0.0
        %2025 = vmatpush1.msra.mxu0 %v932
        %2026 = vmatprep.subr.mxu0 0.0
        %2027 = vmatpush1.msra.mxu0 %v933
        %2028 = vmatprep.subr.mxu0 0.0
        %2029 = vmatpush1.msra.mxu0 %v934
        %2030 = vmatprep.subr.mxu0 0.0
        %2031 = vmatpush1.msra.mxu0 %v935
        %2032 = vmatprep.subr.mxu0 0.0
        %2033 = vmatpush1.msra.mxu0 %v936
        %2034 = vmatprep.subr.mxu0 0.0
        %2035 = vmatpush1.msra.mxu0 %v937
        %2036 = vmatprep.subr.mxu0 0.0
        %2037 = vmatpush1.msra.mxu0 %v938
        %2038 = vmatprep.subr.mxu0 0.0
        %2039 = vmatpush1.msra.mxu0 %v939
        %2040 = vmatprep.subr.mxu0 0.0
        %2041 = vmatpush1.msra.mxu0 %v940
        %2042 = vmatprep.subr.mxu0 0.0
        %2043 = vmatpush1.msra.mxu0 %v941
        %2044 = vmatprep.subr.mxu0 0.0
        %2045 = vmatpush1.msra.mxu0 %v942
        %2046 = vmatprep.subr.mxu0 0.0
        %2047 = vmatpush1.msra.mxu0 %v943
        %2048 = vmatprep.subr.mxu0 0.0
        %2049 = vmatpush1.msra.mxu0 %v944
        %2050 = vmatprep.subr.mxu0 0.0
        %2051 = vmatpush1.msra.mxu0 %v945
        %2052 = vmatprep.subr.mxu0 0.0
        %2053 = vmatpush1.msra.mxu0 %v946
        %2054 = vmatprep.subr.mxu0 0.0
        %2055 = vmatpush1.msra.mxu0 %v947
        %2056 = vmatprep.subr.mxu0 0.0
        %2057 = vmatpush1.msra.mxu0 %v948
        %2058 = vmatprep.subr.mxu0 0.0
        %2059 = vmatpush1.msra.mxu0 %v949
        %2060 = vmatprep.subr.mxu0 0.0
        %2061 = vmatpush1.msra.mxu0 %v950
        %2062 = vmatprep.subr.mxu0 0.0
        %2063 = vmatpush1.msra.mxu0 %v951
        %2064 = vmatprep.subr.mxu0 0.0
        %2065 = vmatpush1.msra.mxu0 %v952
        %2066 = vmatprep.subr.mxu0 0.0
        %2067 = vmatpush1.msra.mxu0 %v953
        %2068 = vmatprep.mubr.f32.mxu0 %v441
        %2069 = vmatmul.mubr.f32.gmra.mrb[0].mxu0 %v440
        %v2070 = vpop.f32.mrb[0].mxu0
        %v2071 = vadd.f32 %v2001, %v2070
        %v2072 = vpop.f32.mrb[0].mxu0
        %2073 = vdwg.mxu0
        %v2074 = vxor.u32 %v2071, 2147483648
        %v2075 = vmul.f32 %v2074, 1.442695
        %v2076 = vpow.pop %v2075
        %v2077 = vadd.f32 %v2076, 1.0
        %v2078 = vrcp.pop %v2077
        %v2079 = vmul.f32 1.0, %v2078
        %2080 = vmatprep.subr.mxu0 0.0
        %2081 = vmatpush1.msra.mxu0 %v383
        %2082 = vmatprep.subr.mxu0 0.0
        %2083 = vmatpush1.msra.mxu0 %v384
        %2084 = vmatprep.subr.mxu0 0.0
        %2085 = vmatpush1.msra.mxu0 %v385
        %2086 = vmatprep.subr.mxu0 0.0
        %2087 = vmatpush1.msra.mxu0 %v386
        %2088 = vmatprep.subr.mxu0 0.0
        %2089 = vmatpush1.msra.mxu0 %v387
        %2090 = vmatprep.subr.mxu0 0.0
        %2091 = vmatpush1.msra.mxu0 %v388
        %2092 = vmatprep.subr.mxu0 0.0
        %2093 = vmatpush1.msra.mxu0 %v389
        %2094 = vmatprep.subr.mxu0 0.0
        %2095 = vmatpush1.msra.mxu0 %v390
        %2096 = vmatprep.subr.mxu0 0.0
        %2097 = vmatpush1.msra.mxu0 %v391
        %2098 = vmatprep.subr.mxu0 0.0
        %2099 = vmatpush1.msra.mxu0 %v392
        %2100 = vmatprep.subr.mxu0 0.0
        %2101 = vmatpush1.msra.mxu0 %v393
        %2102 = vmatprep.subr.mxu0 0.0
        %2103 = vmatpush1.msra.mxu0 %v394
        %2104 = vmatprep.subr.mxu0 0.0
        %2105 = vmatpush1.msra.mxu0 %v395
        %2106 = vmatprep.subr.mxu0 0.0
        %2107 = vmatpush1.msra.mxu0 %v396
        %2108 = vmatprep.subr.mxu0 0.0
        %2109 = vmatpush1.msra.mxu0 %v397
        %2110 = vmatprep.subr.mxu0 0.0
        %2111 = vmatpush1.msra.mxu0 %v398
        %2112 = vmatprep.subr.mxu0 0.0
        %2113 = vmatpush1.msra.mxu0 0.0
        %2114 = vmatprep.subr.mxu0 0.0
        %2115 = vmatpush1.msra.mxu0 0.0
        %2116 = vmatprep.subr.mxu0 0.0
        %2117 = vmatpush1.msra.mxu0 0.0
        %2118 = vmatprep.subr.mxu0 0.0
        %2119 = vmatpush1.msra.mxu0 0.0
        %2120 = vmatprep.subr.mxu0 0.0
        %2121 = vmatpush1.msra.mxu0 0.0
        %2122 = vmatprep.subr.mxu0 0.0
        %2123 = vmatpush1.msra.mxu0 0.0
        %2124 = vmatprep.subr.mxu0 0.0
        %2125 = vmatpush1.msra.mxu0 0.0
        %2126 = vmatprep.subr.mxu0 0.0
        %2127 = vmatpush1.msra.mxu0 0.0
        %2128 = vmatprep.subr.mxu0 0.0
        %2129 = vmatpush1.msra.mxu0 0.0
        %2130 = vmatprep.subr.mxu0 0.0
        %2131 = vmatpush1.msra.mxu0 0.0
        %2132 = vmatprep.subr.mxu0 0.0
        %2133 = vmatpush1.msra.mxu0 0.0
        %2134 = vmatprep.subr.mxu0 0.0
        %2135 = vmatpush1.msra.mxu0 0.0
        %2136 = vmatprep.subr.mxu0 0.0
        %2137 = vmatpush1.msra.mxu0 0.0
        %2138 = vmatprep.subr.mxu0 0.0
        %2139 = vmatpush1.msra.mxu0 0.0
        %2140 = vmatprep.subr.mxu0 0.0
        %2141 = vmatpush1.msra.mxu0 0.0
        %2142 = vmatprep.subr.mxu0 0.0
        %2143 = vmatpush1.msra.mxu0 0.0
        %2144 = vmatprep.mubr.f32.mxu0 0.0
        %2145 = vmatmul.mubr.f32.gmra.mrb[0].mxu0 %v2079
        %v2146 = vpop.f32.mrb[0].mxu0
        %v2147 = vadd.f32 %v374, %v2146
        %v2148 = vpop.f32.mrb[0].mxu0
        %2149 = vdwg.mxu0
        %v2150 = vmax.f32 %v2147, 0.0
        %vm2151 = vcmask 523264
        %v2153 = vsel %vm2151, %v2150, 0
        %2155 = vmatprep.subr.mxu0 0.0
        %2156 = vmatpush1.msra.mxu0 %v399
        %2157 = vmatprep.subr.mxu0 0.0
        %2158 = vmatpush1.msra.mxu0 %v400
        %2159 = vmatprep.subr.mxu0 0.0
        %2160 = vmatpush1.msra.mxu0 %v401
        %2161 = vmatprep.subr.mxu0 0.0
        %2162 = vmatpush1.msra.mxu0 %v402
        %2163 = vmatprep.subr.mxu0 0.0
        %2164 = vmatpush1.msra.mxu0 %v403
        %2165 = vmatprep.subr.mxu0 0.0
        %2166 = vmatpush1.msra.mxu0 %v404
        %2167 = vmatprep.subr.mxu0 0.0
        %2168 = vmatpush1.msra.mxu0 %v405
        %2169 = vmatprep.subr.mxu0 0.0
        %2170 = vmatpush1.msra.mxu0 %v406
        %2171 = vmatprep.subr.mxu0 0.0
        %2172 = vmatpush1.msra.mxu0 0.0
        %2173 = vmatprep.subr.mxu0 0.0
        %2174 = vmatpush1.msra.mxu0 0.0
        %2175 = vmatprep.subr.mxu0 0.0
        %2176 = vmatpush1.msra.mxu0 0.0
        %2177 = vmatprep.subr.mxu0 0.0
        %2178 = vmatpush1.msra.mxu0 0.0
        %2179 = vmatprep.subr.mxu0 0.0
        %2180 = vmatpush1.msra.mxu0 0.0
        %2181 = vmatprep.subr.mxu0 0.0
        %2182 = vmatpush1.msra.mxu0 0.0
        %2183 = vmatprep.subr.mxu0 0.0
        %2184 = vmatpush1.msra.mxu0 0.0
        %2185 = vmatprep.subr.mxu0 0.0
        %2186 = vmatpush1.msra.mxu0 0.0
        %2187 = vmatprep.subr.mxu0 0.0
        %2188 = vmatpush1.msra.mxu0 0.0
        %2189 = vmatprep.subr.mxu0 0.0
        %2190 = vmatpush1.msra.mxu0 0.0
        %2191 = vmatprep.subr.mxu0 0.0
        %2192 = vmatpush1.msra.mxu0 0.0
        %2193 = vmatprep.subr.mxu0 0.0
        %2194 = vmatpush1.msra.mxu0 0.0
        %2195 = vmatprep.subr.mxu0 0.0
        %2196 = vmatpush1.msra.mxu0 0.0
        %2197 = vmatprep.subr.mxu0 0.0
        %2198 = vmatpush1.msra.mxu0 0.0
        %2199 = vmatprep.subr.mxu0 0.0
        %2200 = vmatpush1.msra.mxu0 0.0
        %2201 = vmatprep.subr.mxu0 0.0
        %2202 = vmatpush1.msra.mxu0 0.0
        %2203 = vmatprep.subr.mxu0 0.0
        %2204 = vmatpush1.msra.mxu0 0.0
        %2205 = vmatprep.subr.mxu0 0.0
        %2206 = vmatpush1.msra.mxu0 0.0
        %2207 = vmatprep.subr.mxu0 0.0
        %2208 = vmatpush1.msra.mxu0 0.0
        %2209 = vmatprep.subr.mxu0 0.0
        %2210 = vmatpush1.msra.mxu0 0.0
        %2211 = vmatprep.subr.mxu0 0.0
        %2212 = vmatpush1.msra.mxu0 0.0
        %2213 = vmatprep.subr.mxu0 0.0
        %2214 = vmatpush1.msra.mxu0 0.0
        %2215 = vmatprep.subr.mxu0 0.0
        %2216 = vmatpush1.msra.mxu0 0.0
        %2217 = vmatprep.subr.mxu0 0.0
        %2218 = vmatpush1.msra.mxu0 0.0
        %2219 = vmatprep.mubr.f32.mxu0 0.0
        %2220 = vmatmul.mubr.f32.gmra.mrb[0].mxu0 %v2153
        %v2221 = vpop.f32.mrb[0].mxu0
        %v2222 = vadd.f32 %v381, %v2221
        %v2223 = vpop.f32.mrb[0].mxu0
        %2224 = vdwg.mxu0
        %2225 = vst [vmem:[%s361] sm:$0xff] %v2222
        %s2226 = sand.u32 %s187, 1
        %s2227 = scalar_lea.sflag [#allocation4], %s2226
        %s2228 = sand.u32 %s187, 1
        %s2229 = smul.addr %s2228, 8
        %s2230 = scalar_lea.vmem [#allocation13], %s2229
        // Predicated region
        $region73: #{_forward_impl.1} parent=47 // pred_check
          %p2231 = pneg %p197
        $region74: #{_forward_impl.1} parent=47 // pred_check_branch
          %2233 = sbr.rel (%p2231) target = $region76
        $region75: #{_forward_impl.1} parent=47 // pred_region
          %s2235 = ssub.s32 128, 128
          %2236 = vsyncadd %s2227, %s2235
          %s2237 = smul.addr %s27, 128
          %s2238 = scalar_lea.hbm %s7, %s2237
          %s2240 = sshll.u32 %s2230, 4
          %s2241 = int_to_ptr.vmem [resolvable:$true] %s2240
          %2243 = dma.vmem_to_hbm [thread:$0]  %s2241, 128, %s2238, %s2227
        $region76: #{_forward_impl.1} parent=47 // pred_fallthru
          _
      $region48: #{_forward_impl.1} parent=5 // pred_fallthru
        _
      %p2244 = scmp.le.s32.totalorder 2, %s22
      // Predicated region
      $region77: #{_forward_impl.1} parent=5 // pred_check
        %p2245 = pneg %p2244
      $region78: #{_forward_impl.1} parent=5 // pred_check_branch
        %2247 = sbr.rel (%p2245) target = $region80
      $region79: #{_forward_impl.1} parent=5 // pred_region
        %s2248 = ssub.s32 %s22, 2
        // Predicated region
        $region81: #{_forward_impl.1} parent=79 // pred_check
          %p2249 = pneg %p203
        $region82: #{_forward_impl.1} parent=79 // pred_check_branch
          %2251 = sbr.rel (%p2249) target = $region84
        $region83: #{_forward_impl.1} parent=79 // pred_region
          %s2252 = sand.u32 %s188, 1
          %s2253 = scalar_lea.sflag [#allocation4], %s2252
          %s2254 = sand.u32 %s188, 1
          %s2255 = smul.addr %s2254, 8
          %s2256 = scalar_lea.vmem [#allocation13], %s2255
          %2257 = dma.done %s2253, 128
        $region84: #{_forward_impl.1} parent=79 // pred_fallthru
          _
      $region80: #{_forward_impl.1} parent=5 // pred_fallthru
        _
    $region6: #{_forward_impl.1} parent=1 // loop_footer
      %s26 = sadd.s32 1, %s22
    $region7: #{_forward_impl.1} parent=1 // loop_footer_branch
      %21 = sbr.rel target = $region3
    $region8: #{_forward_impl.1} parent=1 // loop_exit
      _
    %2258 = vsyncpa [#allocation3], 1
    %s2259 = scalar_lea.sflag [#allocation3], 1
    %2260 = vsyncpa %s2259, 1
    %2261 = vsyncpa [#allocation6], 1
    %2262 = vsyncpa [#allocation9], 1
    %2263 = vsyncpa [#allocation12], 1
    %2264 = vsyncpa [#allocation4], 1
    %s2265 = scalar_lea.sflag [#allocation4], 1
    %2266 = vsyncpa %s2265, 1

</llo_original>
